<compile_context>
chip_gen: v7x
topology: tpu7x:2x2x1
jax: 0.10.0
libtpu: 0.0.40
codegen_flags: <defaults>
</compile_context>

<pallas_src>
import jax
import jax.numpy as jnp
from jax.experimental import pallas as pl
from jax.experimental.pallas import tpu as pltpu

NUM_CLASSES = 10          # MNIST classes
TREES_PER_CLASS = 4       # synthetic ensemble size
DEPTH = 3                 # oblivious-tree depth
NUM_LEAVES = 2 ** DEPTH
NUM_TREES = NUM_CLASSES * TREES_PER_CLASS          # 40
NUM_FEATS = 784                                    # 1 * 28 * 28
TD = NUM_TREES * DEPTH                             # 120 (tree,depth) nodes
TD_PAD = 128                                       # lane-padded node axis
T_PAD = 128                                        # lane-padded tree axis
C_PAD = 128                                        # lane-padded class axis


def xgb_kernel(x_ref, sel_ref, thr_ref, pow_ref, leaf_ref, grp_ref, out_ref):
    # Gather the split feature for every (tree, depth) node via one-hot matmul.
    # x is bf16, selector is one-hot bf16 -> f32 output is the exact pixel value.
    xs = jnp.dot(x_ref[...], sel_ref[...],
                 preferred_element_type=jnp.float32)          # (BN, TD_PAD)
    bits = (xs > thr_ref[...]).astype(jnp.float32)            # (BN, TD_PAD)
    # Oblivious-tree leaf index = sum_d bit_d * 2^d, expressed as a matmul.
    lidx = jnp.dot(bits, pow_ref[...],
                   preferred_element_type=jnp.float32)        # (BN, T_PAD)
    # Leaf-value lookup: leaf table loaded once, unrolled one-hot select.
    leaf = leaf_ref[...]                                      # (NUM_LEAVES, T_PAD)
    margin_t = jnp.zeros_like(lidx)
    for l in range(NUM_LEAVES):
        margin_t = margin_t + jnp.where(lidx == float(l), leaf[l:l + 1, :], 0.0)
    # Per-class margin = sum over that class' trees (base_score cancels in softmax).
    margin_c = jnp.dot(margin_t, grp_ref[...],
                       preferred_element_type=jnp.float32)    # (BN, C_PAD)
    # Mask the padded class lanes so the softmax runs over the 10 real classes.
    cls = jax.lax.broadcasted_iota(jnp.int32, (1, C_PAD), 1)
    margin_c = jnp.where(cls < NUM_CLASSES, margin_c, -1e30)
    # Softmax -> predict_proba (reciprocal on EUP, multiply on VPU).
    m = jnp.max(margin_c, axis=-1, keepdims=True)
    e = jnp.exp(margin_c - m)
    inv = pl.reciprocal(jnp.sum(e, axis=-1, keepdims=True), approx=False)
    out_ref[...] = e * inv


def make_params(key):
    """Deterministic synthetic ensemble parameters (lane-padded to 128)."""
    k_feat, k_thr, k_leaf = jax.random.split(key, 3)
    # Split feature index per (tree, depth) node.
    feat_idx = jax.random.randint(k_feat, (NUM_TREES, DEPTH), 0, NUM_FEATS)
    # One-hot feature selector: (784, TD_PAD), bf16 (exact 0/1 values).
    sel = jnp.zeros((NUM_FEATS, TD_PAD), jnp.float32)
    sel = sel.at[feat_idx.reshape(-1), jnp.arange(TD)].set(1.0)
    sel = sel.astype(jnp.bfloat16)
    # Split thresholds (pixel range [0, 1)); padded lanes get an unreachable 2.0.
    thr = jnp.full((1, TD_PAD), 2.0, jnp.float32)
    thr = thr.at[:, :TD].set(
        jax.random.uniform(k_thr, (1, TD), jnp.float32, minval=0.1, maxval=0.9))
    # Block-diagonal powers-of-two matrix mapping bits -> leaf index.
    pw = jnp.zeros((TD_PAD, T_PAD), jnp.float32)
    pw = pw.at[jnp.arange(TD), jnp.repeat(jnp.arange(NUM_TREES), DEPTH)].set(
        jnp.tile(2.0 ** jnp.arange(DEPTH, dtype=jnp.float32), (NUM_TREES,)))
    # Leaf values: (NUM_LEAVES, T_PAD), zero in padded tree lanes.
    leaf = jnp.zeros((NUM_LEAVES, T_PAD), jnp.float32)
    leaf = leaf.at[:, :NUM_TREES].set(
        0.3 * jax.random.normal(k_leaf, (NUM_LEAVES, NUM_TREES), jnp.float32))
    # Tree -> class grouping matrix (class-major tree ordering), lane-padded.
    grp = jnp.zeros((T_PAD, C_PAD), jnp.float32)
    grp = grp.at[jnp.arange(NUM_TREES),
                 jnp.arange(NUM_TREES) // TREES_PER_CLASS].set(1.0)
    return sel, thr, pw, leaf, grp


def _round_up(a, m):
    return ((a + m - 1) // m) * m


def xgb_forward(x_nchw, params, *, bn=512):
    """torch: x.reshape(-1, 784) -> predict_proba -> (B, 10)."""
    sel, thr, pw, leaf, grp = params
    B = x_nchw.shape[0]
    # bf16 halves the dominant HBM stream; the one-hot gather keeps it exact.
    x = x_nchw.reshape(B, NUM_FEATS).astype(jnp.bfloat16)
    # Fixed batch tile (multiple of 16 for bf16), never over-padding tiny batches.
    bn = _round_up(min(bn, _round_up(B, 16)), 16)
    grid_n = pl.cdiv(B, bn)
    b_pad = grid_n * bn
    if b_pad != B:
        x = jnp.pad(x, ((0, b_pad - B), (0, 0)))
    out = pl.pallas_call(
        xgb_kernel,
        out_shape=jax.ShapeDtypeStruct((b_pad, C_PAD), jnp.float32),
        grid=(grid_n,),
        in_specs=[
            pl.BlockSpec((bn, NUM_FEATS), lambda i: (i, 0)),
            pl.BlockSpec((NUM_FEATS, TD_PAD), lambda i: (0, 0)),
            pl.BlockSpec((1, TD_PAD), lambda i: (0, 0)),
            pl.BlockSpec((TD_PAD, T_PAD), lambda i: (0, 0)),
            pl.BlockSpec((NUM_LEAVES, T_PAD), lambda i: (0, 0)),
            pl.BlockSpec((T_PAD, C_PAD), lambda i: (0, 0)),
        ],
        out_specs=pl.BlockSpec((bn, C_PAD), lambda i: (i, 0)),
        compiler_params=pltpu.CompilerParams(
            dimension_semantics=("parallel",)),
    )(x, sel, thr, pw, leaf, grp)
    return out[:B, :NUM_CLASSES]


def xgb_ref(x_nchw, params):
    """Pure-JAX reference with identical (bf16-consistent) semantics."""
    sel, thr, pw, leaf, grp = params
    x = x_nchw.reshape(-1, NUM_FEATS).astype(jnp.bfloat16)
    xs = jnp.dot(x, sel, preferred_element_type=jnp.float32)
    bits = (xs > thr).astype(jnp.float32)
    lidx = jnp.dot(bits, pw, preferred_element_type=jnp.float32)
    margin_t = jnp.zeros_like(lidx)
    for l in range(NUM_LEAVES):
        margin_t = margin_t + jnp.where(lidx == float(l), leaf[l:l + 1, :], 0.0)
    margin_c = jnp.dot(margin_t, grp,
                       preferred_element_type=jnp.float32)[:, :NUM_CLASSES]
    return jax.nn.softmax(margin_c, axis=-1)


if __name__ == "__main__":
    key = jax.random.PRNGKey(0)
    k_param, k_x = jax.random.split(key)
    params = make_params(k_param)
    # MNIST-like NCHW batch: (B, 1, 28, 28), pixels in [0, 1).
    B = 64
    x = jax.random.uniform(k_x, (B, 1, 28, 28), jnp.float32)

    # bn=32 -> 2 grid steps even at this small demo batch (pipelining / megacore).
    proba = jax.block_until_ready(xgb_forward(x, params, bn=32))
    ref = xgb_ref(x, params)

    assert proba.shape == (B, NUM_CLASSES)
    assert proba.dtype == jnp.float32
    assert jnp.allclose(jnp.sum(proba, axis=-1), 1.0, atol=1e-5)
    assert jnp.allclose(proba, ref, rtol=1e-5, atol=1e-6)
    print("KERNEL_OK")
</pallas_src>

<mosaic_0001>
module attributes {stable_mosaic.version = 11 : i64} {
  func.func @xgb_kernel(%arg0: i32, %arg1: memref<32x784xbf16, #tpu.memory_space<vmem>>, %arg2: memref<784x128xbf16, #tpu.memory_space<vmem>>, %arg3: memref<1x128xf32, #tpu.memory_space<vmem>>, %arg4: memref<128x128xf32, #tpu.memory_space<vmem>>, %arg5: memref<8x128xf32, #tpu.memory_space<vmem>>, %arg6: memref<128x128xf32, #tpu.memory_space<vmem>>, %arg7: memref<32x128xf32, #tpu.memory_space<vmem>>) attributes {dimension_semantics = [#tpu.dimension_semantics<parallel>], iteration_bounds = array<i64: 2>, scalar_prefetch = 0 : i64, scratch_operands = 0 : i64, tpu.core_type = #tpu.core_type<tc>, window_params = [{transform_indices = @transform_0, window_bounds = array<i64: 32, 784>}, {pipeline_mode = #tpu.pipeline_mode<synchronous>, transform_indices = @transform_1, window_bounds = array<i64: 784, 128>}, {pipeline_mode = #tpu.pipeline_mode<synchronous>, transform_indices = @transform_2, window_bounds = array<i64: 1, 128>}, {pipeline_mode = #tpu.pipeline_mode<synchronous>, transform_indices = @transform_3, window_bounds = array<i64: 128, 128>}, {pipeline_mode = #tpu.pipeline_mode<synchronous>, transform_indices = @transform_4, window_bounds = array<i64: 8, 128>}, {pipeline_mode = #tpu.pipeline_mode<synchronous>, transform_indices = @transform_5, window_bounds = array<i64: 128, 128>}, {transform_indices = @transform_6, window_bounds = array<i64: 32, 128>}]} {
    %c0 = arith.constant 0 : index
    %c0_0 = arith.constant 0 : index
    %0 = vector.load %arg1[%c0, %c0_0] : memref<32x784xbf16, #tpu.memory_space<vmem>>, vector<32x784xbf16>
    %c0_1 = arith.constant 0 : index
    %c0_2 = arith.constant 0 : index
    %1 = vector.load %arg2[%c0_1, %c0_2] : memref<784x128xbf16, #tpu.memory_space<vmem>>, vector<784x128xbf16>
    %cst = arith.constant dense<0.000000e+00> : vector<32x128xf32>
    %2 = tpu.matmul %0, %1, %cst {dimension_numbers = #tpu.dot_dimension_numbers<[1], [0], [0], [1], [0, 0, 1, 1], [], []>} : vector<32x784xbf16>, vector<784x128xbf16>, vector<32x128xf32> -> vector<32x128xf32>
    %c0_3 = arith.constant 0 : index
    %c0_4 = arith.constant 0 : index
    %3 = vector.load %arg3[%c0_3, %c0_4] : memref<1x128xf32, #tpu.memory_space<vmem>>, vector<1x128xf32>
    %4 = vector.broadcast %3 : vector<1x128xf32> to vector<32x128xf32>
    %5 = arith.cmpf ogt, %2, %4 : vector<32x128xf32>
    %6 = arith.extui %5 : vector<32x128xi1> to vector<32x128xi32>
    %7 = arith.sitofp %6 : vector<32x128xi32> to vector<32x128xf32>
    %c0_5 = arith.constant 0 : index
    %c0_6 = arith.constant 0 : index
    %8 = vector.load %arg4[%c0_5, %c0_6] : memref<128x128xf32, #tpu.memory_space<vmem>>, vector<128x128xf32>
    %cst_7 = arith.constant dense<0.000000e+00> : vector<32x128xf32>
    %9 = tpu.matmul %7, %8, %cst_7 {dimension_numbers = #tpu.dot_dimension_numbers<[1], [0], [0], [1], [0, 0, 1, 1], [], []>} : vector<32x128xf32>, vector<128x128xf32>, vector<32x128xf32> -> vector<32x128xf32>
    %c0_8 = arith.constant 0 : index
    %c0_9 = arith.constant 0 : index
    %10 = vector.load %arg5[%c0_8, %c0_9] : memref<8x128xf32, #tpu.memory_space<vmem>>, vector<8x128xf32>
    %cst_10 = arith.constant 0.000000e+00 : f32
    %11 = vector.broadcast %cst_10 : f32 to vector<32x128xf32>
    %cst_11 = arith.constant 0.000000e+00 : f32
    %12 = vector.broadcast %cst_11 : f32 to vector<32x128xf32>
    %13 = arith.cmpf oeq, %9, %12 : vector<32x128xf32>
    %14 = vector.extract_strided_slice %10 {offsets = [0, 0], sizes = [1, 128], strides = [1, 1]} : vector<8x128xf32> to vector<1x128xf32>
    %cst_12 = arith.constant 0.000000e+00 : f32
    %15 = vector.shape_cast %14 : vector<1x128xf32> to vector<1x128xf32>
    %16 = vector.broadcast %15 : vector<1x128xf32> to vector<32x128xf32>
    %17 = vector.broadcast %cst_12 : f32 to vector<32x128xf32>
    %18 = arith.select %13, %16, %17 : vector<32x128xi1>, vector<32x128xf32>
    %19 = arith.addf %11, %18 : vector<32x128xf32>
    %cst_13 = arith.constant 1.000000e+00 : f32
    %20 = vector.broadcast %cst_13 : f32 to vector<32x128xf32>
    %21 = arith.cmpf oeq, %9, %20 : vector<32x128xf32>
    %22 = vector.extract_strided_slice %10 {offsets = [1, 0], sizes = [1, 128], strides = [1, 1]} : vector<8x128xf32> to vector<1x128xf32>
    %cst_14 = arith.constant 0.000000e+00 : f32
    %23 = vector.shape_cast %22 : vector<1x128xf32> to vector<1x128xf32>
    %24 = vector.broadcast %23 : vector<1x128xf32> to vector<32x128xf32>
    %25 = vector.broadcast %cst_14 : f32 to vector<32x128xf32>
    %26 = arith.select %21, %24, %25 : vector<32x128xi1>, vector<32x128xf32>
    %27 = arith.addf %19, %26 : vector<32x128xf32>
    %cst_15 = arith.constant 2.000000e+00 : f32
    %28 = vector.broadcast %cst_15 : f32 to vector<32x128xf32>
    %29 = arith.cmpf oeq, %9, %28 : vector<32x128xf32>
    %30 = vector.extract_strided_slice %10 {offsets = [2, 0], sizes = [1, 128], strides = [1, 1]} : vector<8x128xf32> to vector<1x128xf32>
    %cst_16 = arith.constant 0.000000e+00 : f32
    %31 = vector.shape_cast %30 : vector<1x128xf32> to vector<1x128xf32>
    %32 = vector.broadcast %31 : vector<1x128xf32> to vector<32x128xf32>
    %33 = vector.broadcast %cst_16 : f32 to vector<32x128xf32>
    %34 = arith.select %29, %32, %33 : vector<32x128xi1>, vector<32x128xf32>
    %35 = arith.addf %27, %34 : vector<32x128xf32>
    %cst_17 = arith.constant 3.000000e+00 : f32
    %36 = vector.broadcast %cst_17 : f32 to vector<32x128xf32>
    %37 = arith.cmpf oeq, %9, %36 : vector<32x128xf32>
    %38 = vector.extract_strided_slice %10 {offsets = [3, 0], sizes = [1, 128], strides = [1, 1]} : vector<8x128xf32> to vector<1x128xf32>
    %cst_18 = arith.constant 0.000000e+00 : f32
    %39 = vector.shape_cast %38 : vector<1x128xf32> to vector<1x128xf32>
    %40 = vector.broadcast %39 : vector<1x128xf32> to vector<32x128xf32>
    %41 = vector.broadcast %cst_18 : f32 to vector<32x128xf32>
    %42 = arith.select %37, %40, %41 : vector<32x128xi1>, vector<32x128xf32>
    %43 = arith.addf %35, %42 : vector<32x128xf32>
    %cst_19 = arith.constant 4.000000e+00 : f32
    %44 = vector.broadcast %cst_19 : f32 to vector<32x128xf32>
    %45 = arith.cmpf oeq, %9, %44 : vector<32x128xf32>
    %46 = vector.extract_strided_slice %10 {offsets = [4, 0], sizes = [1, 128], strides = [1, 1]} : vector<8x128xf32> to vector<1x128xf32>
    %cst_20 = arith.constant 0.000000e+00 : f32
    %47 = vector.shape_cast %46 : vector<1x128xf32> to vector<1x128xf32>
    %48 = vector.broadcast %47 : vector<1x128xf32> to vector<32x128xf32>
    %49 = vector.broadcast %cst_20 : f32 to vector<32x128xf32>
    %50 = arith.select %45, %48, %49 : vector<32x128xi1>, vector<32x128xf32>
    %51 = arith.addf %43, %50 : vector<32x128xf32>
    %cst_21 = arith.constant 5.000000e+00 : f32
    %52 = vector.broadcast %cst_21 : f32 to vector<32x128xf32>
    %53 = arith.cmpf oeq, %9, %52 : vector<32x128xf32>
    %54 = vector.extract_strided_slice %10 {offsets = [5, 0], sizes = [1, 128], strides = [1, 1]} : vector<8x128xf32> to vector<1x128xf32>
    %cst_22 = arith.constant 0.000000e+00 : f32
    %55 = vector.shape_cast %54 : vector<1x128xf32> to vector<1x128xf32>
    %56 = vector.broadcast %55 : vector<1x128xf32> to vector<32x128xf32>
    %57 = vector.broadcast %cst_22 : f32 to vector<32x128xf32>
    %58 = arith.select %53, %56, %57 : vector<32x128xi1>, vector<32x128xf32>
    %59 = arith.addf %51, %58 : vector<32x128xf32>
    %cst_23 = arith.constant 6.000000e+00 : f32
    %60 = vector.broadcast %cst_23 : f32 to vector<32x128xf32>
    %61 = arith.cmpf oeq, %9, %60 : vector<32x128xf32>
    %62 = vector.extract_strided_slice %10 {offsets = [6, 0], sizes = [1, 128], strides = [1, 1]} : vector<8x128xf32> to vector<1x128xf32>
    %cst_24 = arith.constant 0.000000e+00 : f32
    %63 = vector.shape_cast %62 : vector<1x128xf32> to vector<1x128xf32>
    %64 = vector.broadcast %63 : vector<1x128xf32> to vector<32x128xf32>
    %65 = vector.broadcast %cst_24 : f32 to vector<32x128xf32>
    %66 = arith.select %61, %64, %65 : vector<32x128xi1>, vector<32x128xf32>
    %67 = arith.addf %59, %66 : vector<32x128xf32>
    %cst_25 = arith.constant 7.000000e+00 : f32
    %68 = vector.broadcast %cst_25 : f32 to vector<32x128xf32>
    %69 = arith.cmpf oeq, %9, %68 : vector<32x128xf32>
    %70 = vector.extract_strided_slice %10 {offsets = [7, 0], sizes = [1, 128], strides = [1, 1]} : vector<8x128xf32> to vector<1x128xf32>
    %cst_26 = arith.constant 0.000000e+00 : f32
    %71 = vector.shape_cast %70 : vector<1x128xf32> to vector<1x128xf32>
    %72 = vector.broadcast %71 : vector<1x128xf32> to vector<32x128xf32>
    %73 = vector.broadcast %cst_26 : f32 to vector<32x128xf32>
    %74 = arith.select %69, %72, %73 : vector<32x128xi1>, vector<32x128xf32>
    %75 = arith.addf %67, %74 : vector<32x128xf32>
    %c0_27 = arith.constant 0 : index
    %c0_28 = arith.constant 0 : index
    %76 = vector.load %arg6[%c0_27, %c0_28] : memref<128x128xf32, #tpu.memory_space<vmem>>, vector<128x128xf32>
    %cst_29 = arith.constant dense<0.000000e+00> : vector<32x128xf32>
    %77 = tpu.matmul %75, %76, %cst_29 {dimension_numbers = #tpu.dot_dimension_numbers<[1], [0], [0], [1], [0, 0, 1, 1], [], []>} : vector<32x128xf32>, vector<128x128xf32>, vector<32x128xf32> -> vector<32x128xf32>
    %78 = tpu.iota {dimensions = array<i32: 1>} : vector<1x128xi32>
    %c10_i32 = arith.constant 10 : i32
    %79 = vector.broadcast %c10_i32 : i32 to vector<1x128xi32>
    %80 = arith.cmpi slt, %78, %79 : vector<1x128xi32>
    %cst_30 = arith.constant -1.000000e+30 : f32
    %81 = vector.shape_cast %80 : vector<1x128xi1> to vector<1x128xi1>
    %82 = vector.broadcast %81 : vector<1x128xi1> to vector<32x128xi1>
    %83 = vector.broadcast %cst_30 : f32 to vector<32x128xf32>
    %84 = arith.select %82, %77, %83 : vector<32x128xi1>, vector<32x128xf32>
    %cst_31 = arith.constant dense<0xFF800000> : vector<32xf32>
    %85 = vector.multi_reduction <maximumf>, %84, %cst_31 [1] : vector<32x128xf32> to vector<32xf32>
    %86 = vector.shape_cast %85 : vector<32xf32> to vector<32x1xf32>
    %87 = vector.broadcast %86 : vector<32x1xf32> to vector<32x128xf32>
    %88 = arith.subf %84, %87 : vector<32x128xf32>
    %89 = math.exp %88 : vector<32x128xf32>
    %cst_32 = arith.constant dense<0.000000e+00> : vector<32xf32>
    %90 = vector.multi_reduction <add>, %89, %cst_32 [1] : vector<32x128xf32> to vector<32xf32>
    %91 = vector.shape_cast %90 : vector<32xf32> to vector<32x1xf32>
    %92 = tpu.reciprocal %91 : vector<32x1xf32> -> vector<32x1xf32>
    %93 = vector.broadcast %92 : vector<32x1xf32> to vector<32x128xf32>
    %94 = arith.mulf %89, %93 : vector<32x128xf32>
    %c0_33 = arith.constant 0 : index
    %c0_34 = arith.constant 0 : index
    %95 = vector.load %arg7[%c0_33, %c0_34] : memref<32x128xf32, #tpu.memory_space<vmem>>, vector<32x128xf32>
    tpu.vector_store %arg7[%c0_33, %c0_34], %94 {strides = array<i32>} : memref<32x128xf32, #tpu.memory_space<vmem>>, vector<32x128xf32>,
    return
  }
  func.func @transform_0(%arg0: i32) -> (i32, i32) {
    %c0_i32 = arith.constant 0 : i32
    %c0_i32_0 = arith.constant 0 : i32
    return %arg0, %c0_i32 : i32, i32
  }
  func.func @transform_1(%arg0: i32) -> (i32, i32) {
    %c0_i32 = arith.constant 0 : i32
    %c0_i32_0 = arith.constant 0 : i32
    %c0_i32_1 = arith.constant 0 : i32
    return %c0_i32, %c0_i32_0 : i32, i32
  }
  func.func @transform_2(%arg0: i32) -> (i32, i32) {
    %c0_i32 = arith.constant 0 : i32
    %c0_i32_0 = arith.constant 0 : i32
    %c0_i32_1 = arith.constant 0 : i32
    return %c0_i32, %c0_i32_0 : i32, i32
  }
  func.func @transform_3(%arg0: i32) -> (i32, i32) {
    %c0_i32 = arith.constant 0 : i32
    %c0_i32_0 = arith.constant 0 : i32
    %c0_i32_1 = arith.constant 0 : i32
    return %c0_i32, %c0_i32_0 : i32, i32
  }
  func.func @transform_4(%arg0: i32) -> (i32, i32) {
    %c0_i32 = arith.constant 0 : i32
    %c0_i32_0 = arith.constant 0 : i32
    %c0_i32_1 = arith.constant 0 : i32
    return %c0_i32, %c0_i32_0 : i32, i32
  }
  func.func @transform_5(%arg0: i32) -> (i32, i32) {
    %c0_i32 = arith.constant 0 : i32
    %c0_i32_0 = arith.constant 0 : i32
    %c0_i32_1 = arith.constant 0 : i32
    return %c0_i32, %c0_i32_0 : i32, i32
  }
  func.func @transform_6(%arg0: i32) -> (i32, i32) {
    %c0_i32 = arith.constant 0 : i32
    %c0_i32_0 = arith.constant 0 : i32
    return %arg0, %c0_i32 : i32, i32
  }
}

</mosaic_0001>

<llo_original>
// kernel: tpu_custom_call.1
$region0: #{tpu_custom_call.1}
  #allocation0 [shape = 'u32[]', space=smem, size = 0x4, offset = 0x4, fixed_abs, tag = 'smem constant byte address 0x4 - core index']
  #allocation1 [shape = 'u32[144,128]{1,0:T(1,128)}', space=vmem, size = 0x12000, scoped, tag = 'internal scratch']
  %s0 = inlined_call_operand.hbm [shape: bf16[64,784], index: 0, kind: input, shape index: {}]
  %s1 = inlined_call_operand.hbm [shape: bf16[784,128], index: 1, kind: input, shape index: {}]
  %s2 = inlined_call_operand.vmem [shape: f32[1,128], index: 2, kind: input, shape index: {}]
  %s3 = inlined_call_operand.hbm [shape: f32[128,128], index: 3, kind: input, shape index: {}]
  %s4 = inlined_call_operand.vmem [shape: f32[8,128], index: 4, kind: input, shape index: {}]
  %s5 = inlined_call_operand.hbm [shape: f32[128,128], index: 5, kind: input, shape index: {}]
  %s6 = inlined_call_operand.hbm [shape: f32[64,128], index: 6, kind: output, shape index: {}]
  %s7 = sld [smem:[#allocation0]]
  $region73: #{tpu_custom_call.1} parent=0
    _
  %s9 = ssub.s32 1, %s7
  %s10 = scalar_select 0, %s9, %s7
  $region1: #{tpu_custom_call.1} parent=0
    #allocation2 [shape = 'u8[114688]{0}', space=vmem, size = 0x1c000, scoped, tag = 'input window, operand 0']
    #allocation3 [shape = 's32[2]{0}', space=sflag, size = 0x8, scoped, tag = 'scoped memory for tpu_custom_call.1']
    #allocation4 [shape = 's32[2]{0}', space=sflag, size = 0x8, scoped, tag = 'scoped memory for tpu_custom_call.1']
    #allocation5 [shape = 'u8[200704]{0}', space=vmem, size = 0x31000, scoped, tag = 'input window, operand 1, single buffered']
    #allocation6 [shape = 's32[1]{0}', space=sflag, size = 0x4, scoped, tag = 'scoped memory for tpu_custom_call.1']
    #allocation7 [shape = 'u8[65536]{0}', space=vmem, size = 0x10000, scoped, tag = 'input window, operand 3, single buffered']
    #allocation8 [shape = 'u8[65536]{0}', space=vmem, size = 0x10000, scoped, tag = 'input window, operand 5, single buffered']
    #allocation9 [shape = 's32[1]{0}', space=sflag, size = 0x4, scoped, tag = 'scoped memory for tpu_custom_call.1']
    #allocation10 [shape = 'u8[32768]{0}', space=vmem, size = 0x8000, scoped, tag = 'output window, operand 0']
    %11 = vsyncpa [#allocation3], 0
    %s12 = scalar_lea.sflag [#allocation3], 1
    %13 = vsyncpa %s12, 0
    %14 = vsyncpa [#allocation6], 0
    %15 = vsyncpa [#allocation9], 0
    %16 = vsyncpa [#allocation4], 0
    %s17 = scalar_lea.sflag [#allocation4], 1
    %18 = vsyncpa %s17, 0
    loop: start=0, step=1, limit=4
    $region2: #{tpu_custom_call.1} parent=1 // loop_pre_header
      _
    $region3: #{tpu_custom_call.1} parent=1 // loop_header
      %s20 = sphi 0, %s24
      %p21 = scmp.ge.s32.totalorder %s20, 4
      %s30 = sphi 0, %s32
      %s33 = sphi 0, %s30
      %s34 = sphi 0, %s33
      %s50 = sphi 0, %s34
      %s54 = sphi 0, %s54
      %s56 = sphi 0, %s54
      %s57 = sphi 0, %s56
      %s71 = sphi 0, %s57
      %s75 = sphi 0, %s75
      %s77 = sphi 0, %s75
      %s78 = sphi 0, %s77
      %s92 = sphi 0, %s78
      %s96 = sphi 0, %s96
      %s98 = sphi 0, %s96
      %s99 = sphi 0, %s98
      %s113 = sphi 0, %s99
      %s117 = sphi 0, %s117
      %s119 = sphi 0, %s117
      %s120 = sphi 0, %s119
      %s134 = sphi 0, %s120
      %s138 = sphi 0, %s138
      %s140 = sphi 0, %s138
      %s141 = sphi 0, %s140
      %s155 = sphi 0, %s141
      %s161 = sphi 0, %s163
      %s164 = sphi 0, %s161
      %s165 = sphi 0, %s164
      %s181 = sphi 0, %s165
    $region4: #{tpu_custom_call.1} parent=1 // loop_header_branch
      %23 = sbr.rel (%p21) target = $region8
    $region5: #{tpu_custom_call.1} parent=1 // loop_body
      %s25 = ssub.s32 %s20, 1
      %s26 = ssub.s32 %s20, 2
      %s27 = sadd.s32 %s20, 1
      %s28 = ssub.s32 %s20, %s27
      %p29 = scmp.eq.s32.totalorder %s28, 0
      %s31 = sadd.s32 %s30, 1
      %s32 = scalar_select %p29, %s30, %s31
      %p35 = pneg %p29
      %p36 = scmp.eq.s32.totalorder %s20, 1
      %p37 = por %p35, %p36
      %p38 = scmp.ne.s32.totalorder %s30, %s33
      %p39 = scmp.eq.s32.totalorder %s20, 0
      %p40 = por %p38, %p39
      %p41 = scmp.ne.s32.totalorder %s30, %s33
      %p42 = scmp.eq.s32.totalorder %s25, 1
      %p43 = por %p41, %p42
      %p44 = scmp.ne.s32.totalorder %s33, %s34
      %p45 = scmp.eq.s32.totalorder %s25, 0
      %p46 = por %p44, %p45
      %p47 = scmp.ne.s32.totalorder %s33, %s34
      %p48 = scmp.eq.s32.totalorder %s26, 1
      %p49 = por %p47, %p48
      %p51 = scmp.ne.s32.totalorder %s34, %s50
      %p52 = scmp.eq.s32.totalorder %s26, 0
      %p53 = por %p51, %p52
      %s55 = sadd.s32 %s54, 1
      %p58 = scmp.eq.s32.totalorder %s20, 1
      %p59 = scmp.ne.s32.totalorder %s54, %s56
      %p60 = scmp.eq.s32.totalorder %s20, 0
      %p61 = por %p59, %p60
      %p62 = scmp.ne.s32.totalorder %s54, %s56
      %p63 = scmp.eq.s32.totalorder %s25, 1
      %p64 = por %p62, %p63
      %p65 = scmp.ne.s32.totalorder %s56, %s57
      %p66 = scmp.eq.s32.totalorder %s25, 0
      %p67 = por %p65, %p66
      %p68 = scmp.ne.s32.totalorder %s56, %s57
      %p69 = scmp.eq.s32.totalorder %s26, 1
      %p70 = por %p68, %p69
      %p72 = scmp.ne.s32.totalorder %s57, %s71
      %p73 = scmp.eq.s32.totalorder %s26, 0
      %p74 = por %p72, %p73
      %s76 = sadd.s32 %s75, 1
      %p79 = scmp.eq.s32.totalorder %s20, 1
      %p80 = scmp.ne.s32.totalorder %s75, %s77
      %p81 = scmp.eq.s32.totalorder %s20, 0
      %p82 = por %p80, %p81
      %p83 = scmp.ne.s32.totalorder %s75, %s77
      %p84 = scmp.eq.s32.totalorder %s25, 1
      %p85 = por %p83, %p84
      %p86 = scmp.ne.s32.totalorder %s77, %s78
      %p87 = scmp.eq.s32.totalorder %s25, 0
      %p88 = por %p86, %p87
      %p89 = scmp.ne.s32.totalorder %s77, %s78
      %p90 = scmp.eq.s32.totalorder %s26, 1
      %p91 = por %p89, %p90
      %p93 = scmp.ne.s32.totalorder %s78, %s92
      %p94 = scmp.eq.s32.totalorder %s26, 0
      %p95 = por %p93, %p94
      %s97 = sadd.s32 %s96, 1
      %p100 = scmp.eq.s32.totalorder %s20, 1
      %p101 = scmp.ne.s32.totalorder %s96, %s98
      %p102 = scmp.eq.s32.totalorder %s20, 0
      %p103 = por %p101, %p102
      %p104 = scmp.ne.s32.totalorder %s96, %s98
      %p105 = scmp.eq.s32.totalorder %s25, 1
      %p106 = por %p104, %p105
      %p107 = scmp.ne.s32.totalorder %s98, %s99
      %p108 = scmp.eq.s32.totalorder %s25, 0
      %p109 = por %p107, %p108
      %p110 = scmp.ne.s32.totalorder %s98, %s99
      %p111 = scmp.eq.s32.totalorder %s26, 1
      %p112 = por %p110, %p111
      %p114 = scmp.ne.s32.totalorder %s99, %s113
      %p115 = scmp.eq.s32.totalorder %s26, 0
      %p116 = por %p114, %p115
      %s118 = sadd.s32 %s117, 1
      %p121 = scmp.eq.s32.totalorder %s20, 1
      %p122 = scmp.ne.s32.totalorder %s117, %s119
      %p123 = scmp.eq.s32.totalorder %s20, 0
      %p124 = por %p122, %p123
      %p125 = scmp.ne.s32.totalorder %s117, %s119
      %p126 = scmp.eq.s32.totalorder %s25, 1
      %p127 = por %p125, %p126
      %p128 = scmp.ne.s32.totalorder %s119, %s120
      %p129 = scmp.eq.s32.totalorder %s25, 0
      %p130 = por %p128, %p129
      %p131 = scmp.ne.s32.totalorder %s119, %s120
      %p132 = scmp.eq.s32.totalorder %s26, 1
      %p133 = por %p131, %p132
      %p135 = scmp.ne.s32.totalorder %s120, %s134
      %p136 = scmp.eq.s32.totalorder %s26, 0
      %p137 = por %p135, %p136
      %s139 = sadd.s32 %s138, 1
      %p142 = scmp.eq.s32.totalorder %s20, 1
      %p143 = scmp.ne.s32.totalorder %s138, %s140
      %p144 = scmp.eq.s32.totalorder %s20, 0
      %p145 = por %p143, %p144
      %p146 = scmp.ne.s32.totalorder %s138, %s140
      %p147 = scmp.eq.s32.totalorder %s25, 1
      %p148 = por %p146, %p147
      %p149 = scmp.ne.s32.totalorder %s140, %s141
      %p150 = scmp.eq.s32.totalorder %s25, 0
      %p151 = por %p149, %p150
      %p152 = scmp.ne.s32.totalorder %s140, %s141
      %p153 = scmp.eq.s32.totalorder %s26, 1
      %p154 = por %p152, %p153
      %p156 = scmp.ne.s32.totalorder %s141, %s155
      %p157 = scmp.eq.s32.totalorder %s26, 0
      %p158 = por %p156, %p157
      %s159 = ssub.s32 %s20, %s27
      %p160 = scmp.eq.s32.totalorder %s159, 0
      %s162 = sadd.s32 %s161, 1
      %s163 = scalar_select %p160, %s161, %s162
      %p166 = pneg %p160
      %p167 = scmp.eq.s32.totalorder %s20, 1
      %p168 = por %p166, %p167
      %p169 = scmp.ne.s32.totalorder %s161, %s164
      %p170 = scmp.eq.s32.totalorder %s20, 0
      %p171 = por %p169, %p170
      %p172 = scmp.ne.s32.totalorder %s161, %s164
      %p173 = scmp.eq.s32.totalorder %s25, 1
      %p174 = por %p172, %p173
      %p175 = scmp.ne.s32.totalorder %s164, %s165
      %p176 = scmp.eq.s32.totalorder %s25, 0
      %p177 = por %p175, %p176
      %p178 = scmp.ne.s32.totalorder %s164, %s165
      %p179 = scmp.eq.s32.totalorder %s26, 1
      %p180 = por %p178, %p179
      %p182 = scmp.ne.s32.totalorder %s165, %s181
      %p183 = scmp.eq.s32.totalorder %s26, 0
      %p184 = por %p182, %p183
      %p185 = scmp.le.s32.totalorder 1, %s20
      %p186 = scmp.lt.s32.totalorder %s20, 3
      %p187 = pnand %p185, %p186
      %p188 = pneg %p187
      // Predicated region
      $region9: #{tpu_custom_call.1} parent=5 // pred_check
        _
      $region10: #{tpu_custom_call.1} parent=5 // pred_check_branch
        %190 = sbr.rel (%p187) target = $region12
      $region11: #{tpu_custom_call.1} parent=5 // pred_region
        %s191 = ssub.s32 %s20, 1
        // Predicated region
        $region13: #{tpu_custom_call.1} parent=11 // pred_check
          %p192 = pneg %p67
        $region14: #{tpu_custom_call.1} parent=11 // pred_check_branch
          %194 = sbr.rel (%p192) target = $region16
        $region15: #{tpu_custom_call.1} parent=11 // pred_region
          %s196 = ssub.s32 6272, 6272
          %197 = vsyncadd [#allocation6], %s196
          %s198 = sshll.u32 [#allocation5], 4
          %s199 = int_to_ptr.vmem [resolvable:$true] %s198
          %204 = dma.hbm_to_vmem [thread:$0]  %s1, 6272, %s199, [#allocation6], 64, 64, 4
        $region16: #{tpu_custom_call.1} parent=11 // pred_fallthru
          _
        // Predicated region
        $region17: #{tpu_custom_call.1} parent=11 // pred_check
          %p205 = pneg %p88
        $region18: #{tpu_custom_call.1} parent=11 // pred_check_branch
          %207 = sbr.rel (%p205) target = $region20
        $region19: #{tpu_custom_call.1} parent=11 // pred_region
          _
        $region20: #{tpu_custom_call.1} parent=11 // pred_fallthru
          _
        // Predicated region
        $region21: #{tpu_custom_call.1} parent=11 // pred_check
          %p208 = pneg %p109
        $region22: #{tpu_custom_call.1} parent=11 // pred_check_branch
          %210 = sbr.rel (%p208) target = $region24
        $region23: #{tpu_custom_call.1} parent=11 // pred_region
          %s212 = ssub.s32 2048, 2048
          %213 = vsyncadd [#allocation6], %s212
          %s214 = sshll.u32 [#allocation7], 4
          %s215 = int_to_ptr.vmem [resolvable:$true] %s214
          %220 = dma.hbm_to_vmem [thread:$0]  %s3, 2048, %s215, [#allocation6], 128, 128, 8
        $region24: #{tpu_custom_call.1} parent=11 // pred_fallthru
          _
        // Predicated region
        $region25: #{tpu_custom_call.1} parent=11 // pred_check
          %p221 = pneg %p130
        $region26: #{tpu_custom_call.1} parent=11 // pred_check_branch
          %223 = sbr.rel (%p221) target = $region28
        $region27: #{tpu_custom_call.1} parent=11 // pred_region
          _
        $region28: #{tpu_custom_call.1} parent=11 // pred_fallthru
          _
        // Predicated region
        $region29: #{tpu_custom_call.1} parent=11 // pred_check
          %p224 = pneg %p151
        $region30: #{tpu_custom_call.1} parent=11 // pred_check_branch
          %226 = sbr.rel (%p224) target = $region32
        $region31: #{tpu_custom_call.1} parent=11 // pred_region
          %s228 = ssub.s32 2048, 2048
          %229 = vsyncadd [#allocation9], %s228
          %s230 = sshll.u32 [#allocation8], 4
          %s231 = int_to_ptr.vmem [resolvable:$true] %s230
          %236 = dma.hbm_to_vmem [thread:$0]  %s5, 2048, %s231, [#allocation9], 128, 128, 8
        $region32: #{tpu_custom_call.1} parent=11 // pred_fallthru
          _
      $region12: #{tpu_custom_call.1} parent=5 // pred_fallthru
        _
      %p237 = scmp.lt.s32.totalorder %s20, 2
      // Predicated region
      $region33: #{tpu_custom_call.1} parent=5 // pred_check
        %p238 = pneg %p237
      $region34: #{tpu_custom_call.1} parent=5 // pred_check_branch
        %240 = sbr.rel (%p238) target = $region36
      $region35: #{tpu_custom_call.1} parent=5 // pred_region
        // Predicated region
        $region37: #{tpu_custom_call.1} parent=35 // pred_check
          %p241 = pneg %p40
        $region38: #{tpu_custom_call.1} parent=35 // pred_check_branch
          %243 = sbr.rel (%p241) target = $region40
        $region39: #{tpu_custom_call.1} parent=35 // pred_region
          %s244 = sand.u32 %s30, 1
          %s245 = scalar_lea.sflag [#allocation3], %s244
          %s246 = sand.u32 %s30, 1
          %s247 = smul.addr %s246, 112
          %s248 = scalar_lea.vmem [#allocation2], %s247
          %s249 = smul.u32 4, %s20
          %s251 = ssub.s32 1792, 1792
          %252 = vsyncadd %s245, %s251
          %s253 = smul.addr %s249, 7
          %s254 = smul.addr %s253, 64
          %s255 = scalar_lea.hbm %s0, %s254
          %s256 = sshll.u32 %s248, 4
          %s257 = int_to_ptr.vmem [resolvable:$true] %s256
          %262 = dma.hbm_to_vmem [thread:$0]  %s255, 1792, %s257, %s245, 448, 448, 28
        $region40: #{tpu_custom_call.1} parent=35 // pred_fallthru
          _
      $region36: #{tpu_custom_call.1} parent=5 // pred_fallthru
        _
      %p263 = scmp.le.s32.totalorder 1, %s20
      %p264 = scmp.lt.s32.totalorder %s20, 3
      %p265 = pnand %p263, %p264
      %p266 = pneg %p265
      // Predicated region
      $region41: #{tpu_custom_call.1} parent=5 // pred_check
        _
      $region42: #{tpu_custom_call.1} parent=5 // pred_check_branch
        %268 = sbr.rel (%p265) target = $region44
      $region43: #{tpu_custom_call.1} parent=5 // pred_region
        %s269 = ssub.s32 %s20, 1
        %s270 = sand.u32 %s33, 1
        %s271 = scalar_lea.sflag [#allocation3], %s270
        %s272 = sand.u32 %s33, 1
        %s273 = smul.addr %s272, 112
        %s274 = scalar_lea.vmem [#allocation2], %s273
        // Predicated region
        $region45: #{tpu_custom_call.1} parent=43 // pred_check
          %p275 = pneg %p46
        $region46: #{tpu_custom_call.1} parent=43 // pred_check_branch
          %277 = sbr.rel (%p275) target = $region48
        $region47: #{tpu_custom_call.1} parent=43 // pred_region
          %278 = dma.done %s271, 1792
        $region48: #{tpu_custom_call.1} parent=43 // pred_fallthru
          _
        // Predicated region
        $region49: #{tpu_custom_call.1} parent=43 // pred_check
          %p279 = pneg %p67
        $region50: #{tpu_custom_call.1} parent=43 // pred_check_branch
          %281 = sbr.rel (%p279) target = $region52
        $region51: #{tpu_custom_call.1} parent=43 // pred_region
          %282 = dma.done [#allocation6], 6272
        $region52: #{tpu_custom_call.1} parent=43 // pred_fallthru
          _
        // Predicated region
        $region53: #{tpu_custom_call.1} parent=43 // pred_check
          %p283 = pneg %p109
        $region54: #{tpu_custom_call.1} parent=43 // pred_check_branch
          %285 = sbr.rel (%p283) target = $region56
        $region55: #{tpu_custom_call.1} parent=43 // pred_region
          %286 = dma.done [#allocation6], 2048
        $region56: #{tpu_custom_call.1} parent=43 // pred_fallthru
          _
        // Predicated region
        $region57: #{tpu_custom_call.1} parent=43 // pred_check
          %p287 = pneg %p151
        $region58: #{tpu_custom_call.1} parent=43 // pred_check_branch
          %289 = sbr.rel (%p287) target = $region60
        $region59: #{tpu_custom_call.1} parent=43 // pred_region
          %290 = dma.done [#allocation9], 2048
        $region60: #{tpu_custom_call.1} parent=43 // pred_fallthru
          _
        %s291 = sand.u32 %s33, 1
        %s292 = scalar_lea.sflag [#allocation3], %s291
        %s293 = sand.u32 %s33, 1
        %s294 = smul.addr %s293, 112
        %s295 = scalar_lea.vmem [#allocation2], %s294
        %p296 = pneg %p46
        %p297 = pneg %p43
        %p298 = pneg %p67
        %p299 = pneg %p64
        %p300 = pneg %p88
        %p301 = pneg %p85
        %p302 = pneg %p109
        %p303 = pneg %p106
        %p304 = pneg %p130
        %p305 = pneg %p127
        %p306 = pneg %p151
        %p307 = pneg %p148
        %p308 = pneg %p177
        %p309 = pneg %p174
        %s310 = sand.u32 %s164, 1
        %s311 = scalar_lea.sflag [#allocation4], %s310
        %s312 = sand.u32 %s164, 1
        %s313 = smul.addr %s312, 32
        %s314 = scalar_lea.vmem [#allocation10], %s313
        %s315 = smul.u32 4, %s25
        %s316 = smul.u32 4, %s25
        %v318 = vld [vmem:[%s274] sm:$0xff]
        %v319 = vld [vmem:[%s274 + $0x8] sm:$0xff]
        %v320 = vld [vmem:[%s274 + $0x10] sm:$0xff]
        %v321 = vld [vmem:[%s274 + $0x18] sm:$0xf]
        %v322 = vld [vmem:[%s274 + $0x1c] sm:$0xff]
        %v323 = vld [vmem:[%s274 + $0x24] sm:$0xff]
        %v324 = vld [vmem:[%s274 + $0x2c] sm:$0xff]
        %v325 = vld [vmem:[%s274 + $0x34] sm:$0xf]
        %v326 = vld [vmem:[%s274 + $0x38] sm:$0xff]
        %v327 = vld [vmem:[%s274 + $0x40] sm:$0xff]
        %v328 = vld [vmem:[%s274 + $0x48] sm:$0xff]
        %v329 = vld [vmem:[%s274 + $0x50] sm:$0xf]
        %v330 = vld [vmem:[%s274 + $0x54] sm:$0xff]
        %v331 = vld [vmem:[%s274 + $0x5c] sm:$0xff]
        %v332 = vld [vmem:[%s274 + $0x64] sm:$0xff]
        %v333 = vld [vmem:[%s274 + $0x6c] sm:$0xf]
        %v334 = vld [vmem:[#allocation5] sm:$0xf]
        %v335 = vld [vmem:[#allocation5 + $0x4] sm:$0xf]
        %v336 = vld [vmem:[#allocation5 + $0x8] sm:$0xf]
        %v337 = vld [vmem:[#allocation5 + $0xc] sm:$0xf]
        %v338 = vld [vmem:[#allocation5 + $0x10] sm:$0xf]
        %v339 = vld [vmem:[#allocation5 + $0x14] sm:$0xf]
        %v340 = vld [vmem:[#allocation5 + $0x18] sm:$0xf]
        %v341 = vld [vmem:[#allocation5 + $0x1c] sm:$0xf]
        %v342 = vld [vmem:[#allocation5 + $0x20] sm:$0xf]
        %v343 = vld [vmem:[#allocation5 + $0x24] sm:$0xf]
        %v344 = vld [vmem:[#allocation5 + $0x28] sm:$0xf]
        %v345 = vld [vmem:[#allocation5 + $0x2c] sm:$0xf]
        %v346 = vld [vmem:[#allocation5 + $0x30] sm:$0xf]
        %v347 = vld [vmem:[#allocation5 + $0x34] sm:$0xf]
        %v348 = vld [vmem:[#allocation5 + $0x38] sm:$0xf]
        %v349 = vld [vmem:[#allocation5 + $0x3c] sm:$0xf]
        %v350 = vld [vmem:[#allocation5 + $0x40] sm:$0xf]
        %v351 = vld [vmem:[#allocation5 + $0x44] sm:$0xf]
        %v352 = vld [vmem:[#allocation5 + $0x48] sm:$0xf]
        %v353 = vld [vmem:[#allocation5 + $0x4c] sm:$0xf]
        %v354 = vld [vmem:[#allocation5 + $0x50] sm:$0xf]
        %v355 = vld [vmem:[#allocation5 + $0x54] sm:$0xf]
        %v356 = vld [vmem:[#allocation5 + $0x58] sm:$0xf]
        %v357 = vld [vmem:[#allocation5 + $0x5c] sm:$0xf]
        %v358 = vld [vmem:[#allocation5 + $0x60] sm:$0xf]
        %v359 = vld [vmem:[#allocation5 + $0x64] sm:$0xf]
        %v360 = vld [vmem:[#allocation5 + $0x68] sm:$0xf]
        %v361 = vld [vmem:[#allocation5 + $0x6c] sm:$0xf]
        %v362 = vld [vmem:[#allocation5 + $0x70] sm:$0xf]
        %v363 = vld [vmem:[#allocation5 + $0x74] sm:$0xf]
        %v364 = vld [vmem:[#allocation5 + $0x78] sm:$0xf]
        %v365 = vld [vmem:[#allocation5 + $0x7c] sm:$0xf]
        %v366 = vld [vmem:[#allocation5 + $0x80] sm:$0xf]
        %v367 = vld [vmem:[#allocation5 + $0x84] sm:$0xf]
        %v368 = vld [vmem:[#allocation5 + $0x88] sm:$0xf]
        %v369 = vld [vmem:[#allocation5 + $0x8c] sm:$0xf]
        %v370 = vld [vmem:[#allocation5 + $0x90] sm:$0xf]
        %v371 = vld [vmem:[#allocation5 + $0x94] sm:$0xf]
        %v372 = vld [vmem:[#allocation5 + $0x98] sm:$0xf]
        %v373 = vld [vmem:[#allocation5 + $0x9c] sm:$0xf]
        %v374 = vld [vmem:[#allocation5 + $0xa0] sm:$0xf]
        %v375 = vld [vmem:[#allocation5 + $0xa4] sm:$0xf]
        %v376 = vld [vmem:[#allocation5 + $0xa8] sm:$0xf]
        %v377 = vld [vmem:[#allocation5 + $0xac] sm:$0xf]
        %v378 = vld [vmem:[#allocation5 + $0xb0] sm:$0xf]
        %v379 = vld [vmem:[#allocation5 + $0xb4] sm:$0xf]
        %v380 = vld [vmem:[#allocation5 + $0xb8] sm:$0xf]
        %v381 = vld [vmem:[#allocation5 + $0xbc] sm:$0xf]
        %v382 = vld [vmem:[#allocation5 + $0xc0] sm:$0xf]
        %v383 = vld [vmem:[#allocation5 + $0xc4] sm:$0xf]
        %v384 = vld [vmem:[#allocation5 + $0xc8] sm:$0xf]
        %v385 = vld [vmem:[#allocation5 + $0xcc] sm:$0xf]
        %v386 = vld [vmem:[#allocation5 + $0xd0] sm:$0xf]
        %v387 = vld [vmem:[#allocation5 + $0xd4] sm:$0xf]
        %v388 = vld [vmem:[#allocation5 + $0xd8] sm:$0xf]
        %v389 = vld [vmem:[#allocation5 + $0xdc] sm:$0xf]
        %v390 = vld [vmem:[#allocation5 + $0xe0] sm:$0xf]
        %v391 = vld [vmem:[#allocation5 + $0xe4] sm:$0xf]
        %v392 = vld [vmem:[#allocation5 + $0xe8] sm:$0xf]
        %v393 = vld [vmem:[#allocation5 + $0xec] sm:$0xf]
        %v394 = vld [vmem:[#allocation5 + $0xf0] sm:$0xf]
        %v395 = vld [vmem:[#allocation5 + $0xf4] sm:$0xf]
        %v396 = vld [vmem:[#allocation5 + $0xf8] sm:$0xf]
        %v397 = vld [vmem:[#allocation5 + $0xfc] sm:$0xf]
        %v398 = vld [vmem:[#allocation5 + $0x100] sm:$0xf]
        %v399 = vld [vmem:[#allocation5 + $0x104] sm:$0xf]
        %v400 = vld [vmem:[#allocation5 + $0x108] sm:$0xf]
        %v401 = vld [vmem:[#allocation5 + $0x10c] sm:$0xf]
        %v402 = vld [vmem:[#allocation5 + $0x110] sm:$0xf]
        %v403 = vld [vmem:[#allocation5 + $0x114] sm:$0xf]
        %v404 = vld [vmem:[#allocation5 + $0x118] sm:$0xf]
        %v405 = vld [vmem:[#allocation5 + $0x11c] sm:$0xf]
        %v406 = vld [vmem:[#allocation5 + $0x120] sm:$0xf]
        %v407 = vld [vmem:[#allocation5 + $0x124] sm:$0xf]
        %v408 = vld [vmem:[#allocation5 + $0x128] sm:$0xf]
        %v409 = vld [vmem:[#allocation5 + $0x12c] sm:$0xf]
        %v410 = vld [vmem:[#allocation5 + $0x130] sm:$0xf]
        %v411 = vld [vmem:[#allocation5 + $0x134] sm:$0xf]
        %v412 = vld [vmem:[#allocation5 + $0x138] sm:$0xf]
        %v413 = vld [vmem:[#allocation5 + $0x13c] sm:$0xf]
        %v414 = vld [vmem:[#allocation5 + $0x140] sm:$0xf]
        %v415 = vld [vmem:[#allocation5 + $0x144] sm:$0xf]
        %v416 = vld [vmem:[#allocation5 + $0x148] sm:$0xf]
        %v417 = vld [vmem:[#allocation5 + $0x14c] sm:$0xf]
        %v418 = vld [vmem:[#allocation5 + $0x150] sm:$0xf]
        %v419 = vld [vmem:[#allocation5 + $0x154] sm:$0xf]
        %v420 = vld [vmem:[#allocation5 + $0x158] sm:$0xf]
        %v421 = vld [vmem:[#allocation5 + $0x15c] sm:$0xf]
        %v422 = vld [vmem:[#allocation5 + $0x160] sm:$0xf]
        %v423 = vld [vmem:[#allocation5 + $0x164] sm:$0xf]
        %v424 = vld [vmem:[#allocation5 + $0x168] sm:$0xf]
        %v425 = vld [vmem:[#allocation5 + $0x16c] sm:$0xf]
        %v426 = vld [vmem:[#allocation5 + $0x170] sm:$0xf]
        %v427 = vld [vmem:[#allocation5 + $0x174] sm:$0xf]
        %v428 = vld [vmem:[#allocation5 + $0x178] sm:$0xf]
        %v429 = vld [vmem:[#allocation5 + $0x17c] sm:$0xf]
        %v430 = vld [vmem:[#allocation5 + $0x180] sm:$0xf]
        %v431 = vld [vmem:[#allocation5 + $0x184] sm:$0xf]
        %v448 = vunpack.c.l.b16 %v318
        %v449 = vunpack.c.h.b16 %v318
        %v450 = vunpack.c.l.b16 %v319
        %v451 = vunpack.c.h.b16 %v319
        %v452 = vunpack.c.l.b16 %v320
        %v453 = vunpack.c.h.b16 %v320
        %v454 = vunpack.c.l.b16 %v321
        %v455 = vunpack.c.l.b16 %v322
        %v456 = vunpack.c.h.b16 %v322
        %v457 = vunpack.c.l.b16 %v323
        %v458 = vunpack.c.h.b16 %v323
        %v459 = vunpack.c.l.b16 %v324
        %v460 = vunpack.c.h.b16 %v324
        %v461 = vunpack.c.l.b16 %v325
        %v462 = vunpack.c.l.b16 %v326
        %v463 = vunpack.c.h.b16 %v326
        %v464 = vunpack.c.l.b16 %v327
        %v465 = vunpack.c.h.b16 %v327
        %v466 = vunpack.c.l.b16 %v328
        %v467 = vunpack.c.h.b16 %v328
        %v468 = vunpack.c.l.b16 %v329
        %v469 = vunpack.c.l.b16 %v330
        %v470 = vunpack.c.h.b16 %v330
        %v471 = vunpack.c.l.b16 %v331
        %v472 = vunpack.c.h.b16 %v331
        %v473 = vunpack.c.l.b16 %v332
        %v474 = vunpack.c.h.b16 %v332
        %v475 = vunpack.c.l.b16 %v333
        %v476 = vpack.c.b16 %v455, %v448
        %v477 = vpack.c.b16 %v456, %v449
        %v478 = vpack.c.b16 %v457, %v450
        %v479 = vpack.c.b16 %v458, %v451
        %v480 = vpack.c.b16 %v459, %v452
        %v481 = vpack.c.b16 %v460, %v453
        %v482 = vpack.c.b16 %v461, %v454
        %v483 = vpack.c.b16 %v469, %v462
        %v484 = vpack.c.b16 %v470, %v463
        %v485 = vpack.c.b16 %v471, %v464
        %v486 = vpack.c.b16 %v472, %v465
        %v487 = vpack.c.b16 %v473, %v466
        %v488 = vpack.c.b16 %v474, %v467
        %v489 = vpack.c.b16 %v475, %v468
        %v600 = vunpack.c.l.b16 %v334
        %v601 = vunpack.c.l.b16 %v335
        %v602 = vunpack.c.l.b16 %v336
        %v603 = vunpack.c.l.b16 %v337
        %v604 = vunpack.c.l.b16 %v338
        %v605 = vunpack.c.l.b16 %v339
        %v606 = vunpack.c.l.b16 %v340
        %v607 = vunpack.c.l.b16 %v341
        %v608 = vunpack.c.l.b16 %v342
        %v609 = vunpack.c.l.b16 %v343
        %v610 = vunpack.c.l.b16 %v344
        %v611 = vunpack.c.l.b16 %v345
        %v612 = vunpack.c.l.b16 %v346
        %v613 = vunpack.c.l.b16 %v347
        %v614 = vunpack.c.l.b16 %v348
        %v615 = vunpack.c.l.b16 %v349
        %v616 = vunpack.c.l.b16 %v350
        %v617 = vunpack.c.l.b16 %v351
        %v618 = vunpack.c.l.b16 %v352
        %v619 = vunpack.c.l.b16 %v353
        %v620 = vunpack.c.l.b16 %v354
        %v621 = vunpack.c.l.b16 %v355
        %v622 = vunpack.c.l.b16 %v356
        %v623 = vunpack.c.l.b16 %v357
        %v624 = vunpack.c.l.b16 %v358
        %v625 = vunpack.c.l.b16 %v359
        %v626 = vunpack.c.l.b16 %v360
        %v627 = vunpack.c.l.b16 %v361
        %v628 = vunpack.c.l.b16 %v362
        %v629 = vunpack.c.l.b16 %v363
        %v630 = vunpack.c.l.b16 %v364
        %v631 = vunpack.c.l.b16 %v365
        %v632 = vunpack.c.l.b16 %v366
        %v633 = vunpack.c.l.b16 %v367
        %v634 = vunpack.c.l.b16 %v368
        %v635 = vunpack.c.l.b16 %v369
        %v636 = vunpack.c.l.b16 %v370
        %v637 = vunpack.c.l.b16 %v371
        %v638 = vunpack.c.l.b16 %v372
        %v639 = vunpack.c.l.b16 %v373
        %v640 = vunpack.c.l.b16 %v374
        %v641 = vunpack.c.l.b16 %v375
        %v642 = vunpack.c.l.b16 %v376
        %v643 = vunpack.c.l.b16 %v377
        %v644 = vunpack.c.l.b16 %v378
        %v645 = vunpack.c.l.b16 %v379
        %v646 = vunpack.c.l.b16 %v380
        %v647 = vunpack.c.l.b16 %v381
        %v648 = vunpack.c.l.b16 %v382
        %v649 = vunpack.c.l.b16 %v383
        %v650 = vunpack.c.l.b16 %v384
        %v651 = vunpack.c.l.b16 %v385
        %v652 = vunpack.c.l.b16 %v386
        %v653 = vunpack.c.l.b16 %v387
        %v654 = vunpack.c.l.b16 %v388
        %v655 = vunpack.c.l.b16 %v389
        %v656 = vunpack.c.l.b16 %v390
        %v657 = vunpack.c.l.b16 %v391
        %v658 = vunpack.c.l.b16 %v392
        %v659 = vunpack.c.l.b16 %v393
        %v660 = vunpack.c.l.b16 %v394
        %v661 = vunpack.c.l.b16 %v395
        %v662 = vunpack.c.l.b16 %v396
        %v663 = vunpack.c.l.b16 %v397
        %v664 = vunpack.c.l.b16 %v398
        %v665 = vunpack.c.l.b16 %v399
        %v666 = vunpack.c.l.b16 %v400
        %v667 = vunpack.c.l.b16 %v401
        %v668 = vunpack.c.l.b16 %v402
        %v669 = vunpack.c.l.b16 %v403
        %v670 = vunpack.c.l.b16 %v404
        %v671 = vunpack.c.l.b16 %v405
        %v672 = vunpack.c.l.b16 %v406
        %v673 = vunpack.c.l.b16 %v407
        %v674 = vunpack.c.l.b16 %v408
        %v675 = vunpack.c.l.b16 %v409
        %v676 = vunpack.c.l.b16 %v410
        %v677 = vunpack.c.l.b16 %v411
        %v678 = vunpack.c.l.b16 %v412
        %v679 = vunpack.c.l.b16 %v413
        %v680 = vunpack.c.l.b16 %v414
        %v681 = vunpack.c.l.b16 %v415
        %v682 = vunpack.c.l.b16 %v416
        %v683 = vunpack.c.l.b16 %v417
        %v684 = vunpack.c.l.b16 %v418
        %v685 = vunpack.c.l.b16 %v419
        %v686 = vunpack.c.l.b16 %v420
        %v687 = vunpack.c.l.b16 %v421
        %v688 = vunpack.c.l.b16 %v422
        %v689 = vunpack.c.l.b16 %v423
        %v690 = vunpack.c.l.b16 %v424
        %v691 = vunpack.c.l.b16 %v425
        %v692 = vunpack.c.l.b16 %v426
        %v693 = vunpack.c.l.b16 %v427
        %v694 = vunpack.c.l.b16 %v428
        %v695 = vunpack.c.l.b16 %v429
        %v696 = vunpack.c.l.b16 %v430
        %v697 = vunpack.c.l.b16 %v431
        %v698 = vpack.c.b16 %v601, %v600
        %v699 = vpack.c.b16 %v603, %v602
        %v700 = vpack.c.b16 %v605, %v604
        %v701 = vpack.c.b16 %v607, %v606
        %v702 = vpack.c.b16 %v609, %v608
        %v703 = vpack.c.b16 %v611, %v610
        %v704 = vpack.c.b16 %v613, %v612
        %v705 = vpack.c.b16 %v615, %v614
        %v706 = vpack.c.b16 %v617, %v616
        %v707 = vpack.c.b16 %v619, %v618
        %v708 = vpack.c.b16 %v621, %v620
        %v709 = vpack.c.b16 %v623, %v622
        %v710 = vpack.c.b16 %v625, %v624
        %v711 = vpack.c.b16 %v627, %v626
        %v712 = vpack.c.b16 %v629, %v628
        %v713 = vpack.c.b16 %v631, %v630
        %v714 = vpack.c.b16 %v633, %v632
        %v715 = vpack.c.b16 %v635, %v634
        %v716 = vpack.c.b16 %v637, %v636
        %v717 = vpack.c.b16 %v639, %v638
        %v718 = vpack.c.b16 %v641, %v640
        %v719 = vpack.c.b16 %v643, %v642
        %v720 = vpack.c.b16 %v645, %v644
        %v721 = vpack.c.b16 %v647, %v646
        %v722 = vpack.c.b16 %v649, %v648
        %v723 = vpack.c.b16 %v651, %v650
        %v724 = vpack.c.b16 %v653, %v652
        %v725 = vpack.c.b16 %v655, %v654
        %v726 = vpack.c.b16 %v657, %v656
        %v727 = vpack.c.b16 %v659, %v658
        %v728 = vpack.c.b16 %v661, %v660
        %v729 = vpack.c.b16 %v663, %v662
        %v730 = vpack.c.b16 %v665, %v664
        %v731 = vpack.c.b16 %v667, %v666
        %v732 = vpack.c.b16 %v669, %v668
        %v733 = vpack.c.b16 %v671, %v670
        %v734 = vpack.c.b16 %v673, %v672
        %v735 = vpack.c.b16 %v675, %v674
        %v736 = vpack.c.b16 %v677, %v676
        %v737 = vpack.c.b16 %v679, %v678
        %v738 = vpack.c.b16 %v681, %v680
        %v739 = vpack.c.b16 %v683, %v682
        %v740 = vpack.c.b16 %v685, %v684
        %v741 = vpack.c.b16 %v687, %v686
        %v742 = vpack.c.b16 %v689, %v688
        %v743 = vpack.c.b16 %v691, %v690
        %v744 = vpack.c.b16 %v693, %v692
        %v745 = vpack.c.b16 %v695, %v694
        %v746 = vpack.c.b16 %v697, %v696
        %vm796 = vcmask 130048
        %v798 = vsel %vm796, %v482, 0
        %v801 = vsel %vm796, %v489, 0
        %803 = vmatprep.subr.bf16.mxu0 0
        %804 = vmatpush1.bf16.msra.mxu0 %v698
        %805 = vmatprep.subr.bf16.mxu0 0
        %806 = vmatpush1.bf16.msra.mxu0 %v699
        %807 = vmatprep.subr.bf16.mxu0 0
        %808 = vmatpush1.bf16.msra.mxu0 %v700
        %809 = vmatprep.subr.bf16.mxu0 0
        %810 = vmatpush1.bf16.msra.mxu0 %v701
        %811 = vmatprep.subr.bf16.mxu0 0
        %812 = vmatpush1.bf16.msra.mxu0 %v702
        %813 = vmatprep.subr.bf16.mxu0 0
        %814 = vmatpush1.bf16.msra.mxu0 %v703
        %815 = vmatprep.subr.bf16.mxu0 0
        %816 = vmatpush1.bf16.msra.mxu0 %v704
        %817 = vmatprep.subr.bf16.mxu0 0
        %818 = vmatpush1.bf16.msra.mxu0 %v705
        %819 = vmatprep.subr.bf16.mxu0 0
        %820 = vmatpush1.bf16.msra.mxu0 %v706
        %821 = vmatprep.subr.bf16.mxu0 0
        %822 = vmatpush1.bf16.msra.mxu0 %v707
        %823 = vmatprep.subr.bf16.mxu0 0
        %824 = vmatpush1.bf16.msra.mxu0 %v708
        %825 = vmatprep.subr.bf16.mxu0 0
        %826 = vmatpush1.bf16.msra.mxu0 %v709
        %827 = vmatprep.subr.bf16.mxu0 0
        %828 = vmatpush1.bf16.msra.mxu0 %v710
        %829 = vmatprep.subr.bf16.mxu0 0
        %830 = vmatpush1.bf16.msra.mxu0 %v711
        %831 = vmatprep.subr.bf16.mxu0 0
        %832 = vmatpush1.bf16.msra.mxu0 %v712
        %833 = vmatprep.subr.bf16.mxu0 0
        %834 = vmatpush1.bf16.msra.mxu0 %v713
        %835 = vmatprep.mubr.bf16.mxu0 %v477
        %836 = vmatmul.mubr.bf16.gmra.mrb[0].mxu0 %v476
        %v837 = vpop.f32.mrb[0].mxu0
        %v838 = vadd.f32 0.0, %v837
        %v839 = vpop.f32.mrb[0].mxu0
        %v840 = vpop.f32.mrb[0].mxu0
        %v841 = vadd.f32 0.0, %v840
        %v842 = vpop.f32.mrb[0].mxu0
        %843 = vmatprep.mubr.bf16.mxu0 %v484
        %844 = vmatmul.mubr.bf16.gmra.mrb[0].mxu0 %v483
        %v845 = vpop.f32.mrb[0].mxu0
        %v846 = vadd.f32 0.0, %v845
        %v847 = vpop.f32.mrb[0].mxu0
        %v848 = vpop.f32.mrb[0].mxu0
        %v849 = vadd.f32 0.0, %v848
        %v850 = vpop.f32.mrb[0].mxu0
        %851 = vdwg.mxu0
        %852 = vmatprep.subr.bf16.mxu0 0
        %853 = vmatpush1.bf16.msra.mxu0 %v714
        %854 = vmatprep.subr.bf16.mxu0 0
        %855 = vmatpush1.bf16.msra.mxu0 %v715
        %856 = vmatprep.subr.bf16.mxu0 0
        %857 = vmatpush1.bf16.msra.mxu0 %v716
        %858 = vmatprep.subr.bf16.mxu0 0
        %859 = vmatpush1.bf16.msra.mxu0 %v717
        %860 = vmatprep.subr.bf16.mxu0 0
        %861 = vmatpush1.bf16.msra.mxu0 %v718
        %862 = vmatprep.subr.bf16.mxu0 0
        %863 = vmatpush1.bf16.msra.mxu0 %v719
        %864 = vmatprep.subr.bf16.mxu0 0
        %865 = vmatpush1.bf16.msra.mxu0 %v720
        %866 = vmatprep.subr.bf16.mxu0 0
        %867 = vmatpush1.bf16.msra.mxu0 %v721
        %868 = vmatprep.subr.bf16.mxu0 0
        %869 = vmatpush1.bf16.msra.mxu0 %v722
        %870 = vmatprep.subr.bf16.mxu0 0
        %871 = vmatpush1.bf16.msra.mxu0 %v723
        %872 = vmatprep.subr.bf16.mxu0 0
        %873 = vmatpush1.bf16.msra.mxu0 %v724
        %874 = vmatprep.subr.bf16.mxu0 0
        %875 = vmatpush1.bf16.msra.mxu0 %v725
        %876 = vmatprep.subr.bf16.mxu0 0
        %877 = vmatpush1.bf16.msra.mxu0 %v726
        %878 = vmatprep.subr.bf16.mxu0 0
        %879 = vmatpush1.bf16.msra.mxu0 %v727
        %880 = vmatprep.subr.bf16.mxu0 0
        %881 = vmatpush1.bf16.msra.mxu0 %v728
        %882 = vmatprep.subr.bf16.mxu0 0
        %883 = vmatpush1.bf16.msra.mxu0 %v729
        %884 = vmatprep.mubr.bf16.mxu0 %v479
        %885 = vmatmul.mubr.bf16.gmra.mrb[0].mxu0 %v478
        %v886 = vpop.f32.mrb[0].mxu0
        %v887 = vadd.f32 %v838, %v886
        %v888 = vpop.f32.mrb[0].mxu0
        %v889 = vpop.f32.mrb[0].mxu0
        %v890 = vadd.f32 %v841, %v889
        %v891 = vpop.f32.mrb[0].mxu0
        %892 = vmatprep.mubr.bf16.mxu0 %v486
        %893 = vmatmul.mubr.bf16.gmra.mrb[0].mxu0 %v485
        %v894 = vpop.f32.mrb[0].mxu0
        %v895 = vadd.f32 %v846, %v894
        %v896 = vpop.f32.mrb[0].mxu0
        %v897 = vpop.f32.mrb[0].mxu0
        %v898 = vadd.f32 %v849, %v897
        %v899 = vpop.f32.mrb[0].mxu0
        %900 = vdwg.mxu0
        %901 = vmatprep.subr.bf16.mxu0 0
        %902 = vmatpush1.bf16.msra.mxu0 %v730
        %903 = vmatprep.subr.bf16.mxu0 0
        %904 = vmatpush1.bf16.msra.mxu0 %v731
        %905 = vmatprep.subr.bf16.mxu0 0
        %906 = vmatpush1.bf16.msra.mxu0 %v732
        %907 = vmatprep.subr.bf16.mxu0 0
        %908 = vmatpush1.bf16.msra.mxu0 %v733
        %909 = vmatprep.subr.bf16.mxu0 0
        %910 = vmatpush1.bf16.msra.mxu0 %v734
        %911 = vmatprep.subr.bf16.mxu0 0
        %912 = vmatpush1.bf16.msra.mxu0 %v735
        %913 = vmatprep.subr.bf16.mxu0 0
        %914 = vmatpush1.bf16.msra.mxu0 %v736
        %915 = vmatprep.subr.bf16.mxu0 0
        %916 = vmatpush1.bf16.msra.mxu0 %v737
        %917 = vmatprep.subr.bf16.mxu0 0
        %918 = vmatpush1.bf16.msra.mxu0 %v738
        %919 = vmatprep.subr.bf16.mxu0 0
        %920 = vmatpush1.bf16.msra.mxu0 %v739
        %921 = vmatprep.subr.bf16.mxu0 0
        %922 = vmatpush1.bf16.msra.mxu0 %v740
        %923 = vmatprep.subr.bf16.mxu0 0
        %924 = vmatpush1.bf16.msra.mxu0 %v741
        %925 = vmatprep.subr.bf16.mxu0 0
        %926 = vmatpush1.bf16.msra.mxu0 %v742
        %927 = vmatprep.subr.bf16.mxu0 0
        %928 = vmatpush1.bf16.msra.mxu0 %v743
        %929 = vmatprep.subr.bf16.mxu0 0
        %930 = vmatpush1.bf16.msra.mxu0 %v744
        %931 = vmatprep.subr.bf16.mxu0 0
        %932 = vmatpush1.bf16.msra.mxu0 %v745
        %933 = vmatprep.mubr.bf16.mxu0 %v481
        %934 = vmatmul.mubr.bf16.gmra.mrb[0].mxu0 %v480
        %v935 = vpop.f32.mrb[0].mxu0
        %v936 = vadd.f32 %v887, %v935
        %v937 = vpop.f32.mrb[0].mxu0
        %v938 = vpop.f32.mrb[0].mxu0
        %v939 = vadd.f32 %v890, %v938
        %v940 = vpop.f32.mrb[0].mxu0
        %941 = vmatprep.mubr.bf16.mxu0 %v488
        %942 = vmatmul.mubr.bf16.gmra.mrb[0].mxu0 %v487
        %v943 = vpop.f32.mrb[0].mxu0
        %v944 = vadd.f32 %v895, %v943
        %v945 = vpop.f32.mrb[0].mxu0
        %v946 = vpop.f32.mrb[0].mxu0
        %v947 = vadd.f32 %v898, %v946
        %v948 = vpop.f32.mrb[0].mxu0
        %949 = vdwg.mxu0
        %950 = vmatprep.subr.bf16.mxu0 0
        %951 = vmatpush1.bf16.msra.mxu0 %v746
        %952 = vmatprep.subr.bf16.mxu0 0
        %953 = vmatpush1.bf16.msra.mxu0 0
        %954 = vmatprep.subr.bf16.mxu0 0
        %955 = vmatpush1.bf16.msra.mxu0 0
        %956 = vmatprep.subr.bf16.mxu0 0
        %957 = vmatpush1.bf16.msra.mxu0 0
        %958 = vmatprep.subr.bf16.mxu0 0
        %959 = vmatpush1.bf16.msra.mxu0 0
        %960 = vmatprep.subr.bf16.mxu0 0
        %961 = vmatpush1.bf16.msra.mxu0 0
        %962 = vmatprep.subr.bf16.mxu0 0
        %963 = vmatpush1.bf16.msra.mxu0 0
        %964 = vmatprep.subr.bf16.mxu0 0
        %965 = vmatpush1.bf16.msra.mxu0 0
        %966 = vmatprep.subr.bf16.mxu0 0
        %967 = vmatpush1.bf16.msra.mxu0 0
        %968 = vmatprep.subr.bf16.mxu0 0
        %969 = vmatpush1.bf16.msra.mxu0 0
        %970 = vmatprep.subr.bf16.mxu0 0
        %971 = vmatpush1.bf16.msra.mxu0 0
        %972 = vmatprep.subr.bf16.mxu0 0
        %973 = vmatpush1.bf16.msra.mxu0 0
        %974 = vmatprep.subr.bf16.mxu0 0
        %975 = vmatpush1.bf16.msra.mxu0 0
        %976 = vmatprep.subr.bf16.mxu0 0
        %977 = vmatpush1.bf16.msra.mxu0 0
        %978 = vmatprep.subr.bf16.mxu0 0
        %979 = vmatpush1.bf16.msra.mxu0 0
        %980 = vmatprep.subr.bf16.mxu0 0
        %981 = vmatpush1.bf16.msra.mxu0 0
        %982 = vmatprep.mubr.bf16.mxu0 0
        %983 = vmatmul.mubr.bf16.gmra.mrb[0].mxu0 %v798
        %v984 = vpop.f32.mrb[0].mxu0
        %v985 = vadd.f32 %v936, %v984
        %v986 = vpop.f32.mrb[0].mxu0
        %v987 = vpop.f32.mrb[0].mxu0
        %v988 = vadd.f32 %v939, %v987
        %v989 = vpop.f32.mrb[0].mxu0
        %990 = vmatprep.mubr.bf16.mxu0 0
        %991 = vmatmul.mubr.bf16.gmra.mrb[0].mxu0 %v801
        %v992 = vpop.f32.mrb[0].mxu0
        %v993 = vadd.f32 %v944, %v992
        %v994 = vpop.f32.mrb[0].mxu0
        %v995 = vpop.f32.mrb[0].mxu0
        %v996 = vadd.f32 %v947, %v995
        %v997 = vpop.f32.mrb[0].mxu0
        %998 = vdwg.mxu0
        %v999 = vld [vmem:[%s2] sm:$0x1]
        %v1001 = vlaneseq
        %v1002 = vshrl.u32 %v1001, 7
        %v1003 = vsub.s32 0, %v1002
        %v1004 = vrot.slane %v999, %v1003
        %vm1006 = vcmp.gt.f32.partialorder %v985, %v1004
        %vm1007 = vcmp.gt.f32.partialorder %v988, %v1004
        %vm1008 = vcmp.gt.f32.partialorder %v993, %v1004
        %vm1009 = vcmp.gt.f32.partialorder %v996, %v1004
        %v1010 = vsel %vm1006, 1, 0
        %v1011 = vsel %vm1007, 1, 0
        %v1012 = vsel %vm1008, 1, 0
        %v1013 = vsel %vm1009, 1, 0
        %v1014 = vcvt.s32.f32 %v1010
        %v1015 = vcvt.s32.f32 %v1011
        %v1016 = vcvt.s32.f32 %v1012
        %v1017 = vcvt.s32.f32 %v1013
        %v1018 = vld [vmem:[#allocation7] sm:$0xff]
        %v1019 = vld [vmem:[#allocation7 + $0x8] sm:$0xff]
        %v1020 = vld [vmem:[#allocation7 + $0x10] sm:$0xff]
        %v1021 = vld [vmem:[#allocation7 + $0x18] sm:$0xff]
        %v1022 = vld [vmem:[#allocation7 + $0x20] sm:$0xff]
        %v1023 = vld [vmem:[#allocation7 + $0x28] sm:$0xff]
        %v1024 = vld [vmem:[#allocation7 + $0x30] sm:$0xff]
        %v1025 = vld [vmem:[#allocation7 + $0x38] sm:$0xff]
        %v1026 = vld [vmem:[#allocation7 + $0x40] sm:$0xff]
        %v1027 = vld [vmem:[#allocation7 + $0x48] sm:$0xff]
        %v1028 = vld [vmem:[#allocation7 + $0x50] sm:$0xff]
        %v1029 = vld [vmem:[#allocation7 + $0x58] sm:$0xff]
        %v1030 = vld [vmem:[#allocation7 + $0x60] sm:$0xff]
        %v1031 = vld [vmem:[#allocation7 + $0x68] sm:$0xff]
        %v1032 = vld [vmem:[#allocation7 + $0x70] sm:$0xff]
        %v1033 = vld [vmem:[#allocation7 + $0x78] sm:$0xff]
        %1034 = vmatprep.subr.mxu0 0.0
        %1035 = vmatpush1.msra.mxu0 %v1018
        %1036 = vmatprep.subr.mxu0 0.0
        %1037 = vmatpush1.msra.mxu0 %v1019
        %1038 = vmatprep.subr.mxu0 0.0
        %1039 = vmatpush1.msra.mxu0 %v1020
        %1040 = vmatprep.subr.mxu0 0.0
        %1041 = vmatpush1.msra.mxu0 %v1021
        %1042 = vmatprep.subr.mxu0 0.0
        %1043 = vmatpush1.msra.mxu0 %v1022
        %1044 = vmatprep.subr.mxu0 0.0
        %1045 = vmatpush1.msra.mxu0 %v1023
        %1046 = vmatprep.subr.mxu0 0.0
        %1047 = vmatpush1.msra.mxu0 %v1024
        %1048 = vmatprep.subr.mxu0 0.0
        %1049 = vmatpush1.msra.mxu0 %v1025
        %1050 = vmatprep.subr.mxu0 0.0
        %1051 = vmatpush1.msra.mxu0 %v1026
        %1052 = vmatprep.subr.mxu0 0.0
        %1053 = vmatpush1.msra.mxu0 %v1027
        %1054 = vmatprep.subr.mxu0 0.0
        %1055 = vmatpush1.msra.mxu0 %v1028
        %1056 = vmatprep.subr.mxu0 0.0
        %1057 = vmatpush1.msra.mxu0 %v1029
        %1058 = vmatprep.subr.mxu0 0.0
        %1059 = vmatpush1.msra.mxu0 %v1030
        %1060 = vmatprep.subr.mxu0 0.0
        %1061 = vmatpush1.msra.mxu0 %v1031
        %1062 = vmatprep.subr.mxu0 0.0
        %1063 = vmatpush1.msra.mxu0 %v1032
        %1064 = vmatprep.subr.mxu0 0.0
        %1065 = vmatpush1.msra.mxu0 %v1033
        %1066 = vmatprep.subr.mxu0 0.0
        %1067 = vmatpush1.msra.mxu0 0.0
        %1068 = vmatprep.subr.mxu0 0.0
        %1069 = vmatpush1.msra.mxu0 0.0
        %1070 = vmatprep.subr.mxu0 0.0
        %1071 = vmatpush1.msra.mxu0 0.0
        %1072 = vmatprep.subr.mxu0 0.0
        %1073 = vmatpush1.msra.mxu0 0.0
        %1074 = vmatprep.subr.mxu0 0.0
        %1075 = vmatpush1.msra.mxu0 0.0
        %1076 = vmatprep.subr.mxu0 0.0
        %1077 = vmatpush1.msra.mxu0 0.0
        %1078 = vmatprep.subr.mxu0 0.0
        %1079 = vmatpush1.msra.mxu0 0.0
        %1080 = vmatprep.subr.mxu0 0.0
        %1081 = vmatpush1.msra.mxu0 0.0
        %1082 = vmatprep.subr.mxu0 0.0
        %1083 = vmatpush1.msra.mxu0 0.0
        %1084 = vmatprep.subr.mxu0 0.0
        %1085 = vmatpush1.msra.mxu0 0.0
        %1086 = vmatprep.subr.mxu0 0.0
        %1087 = vmatpush1.msra.mxu0 0.0
        %1088 = vmatprep.subr.mxu0 0.0
        %1089 = vmatpush1.msra.mxu0 0.0
        %1090 = vmatprep.subr.mxu0 0.0
        %1091 = vmatpush1.msra.mxu0 0.0
        %1092 = vmatprep.subr.mxu0 0.0
        %1093 = vmatpush1.msra.mxu0 0.0
        %1094 = vmatprep.subr.mxu0 0.0
        %1095 = vmatpush1.msra.mxu0 0.0
        %1096 = vmatprep.subr.mxu0 0.0
        %1097 = vmatpush1.msra.mxu0 0.0
        %1098 = vmatprep.mubr.f32.mxu0 0.0
        %1099 = vmatmul.mubr.f32.gmra.mrb[0].mxu0 %v1014
        %v1100 = vpop.f32.mrb[0].mxu0
        %v1101 = vadd.f32 0.0, %v1100
        %v1102 = vpop.f32.mrb[0].mxu0
        %1103 = vmatprep.mubr.f32.mxu0 0.0
        %1104 = vmatmul.mubr.f32.gmra.mrb[0].mxu0 %v1015
        %v1105 = vpop.f32.mrb[0].mxu0
        %v1106 = vadd.f32 0.0, %v1105
        %v1107 = vpop.f32.mrb[0].mxu0
        %1108 = vmatprep.mubr.f32.mxu0 0.0
        %1109 = vmatmul.mubr.f32.gmra.mrb[0].mxu0 %v1016
        %v1110 = vpop.f32.mrb[0].mxu0
        %v1111 = vadd.f32 0.0, %v1110
        %v1112 = vpop.f32.mrb[0].mxu0
        %1113 = vmatprep.mubr.f32.mxu0 0.0
        %1114 = vmatmul.mubr.f32.gmra.mrb[0].mxu0 %v1017
        %v1115 = vpop.f32.mrb[0].mxu0
        %v1116 = vadd.f32 0.0, %v1115
        %v1117 = vpop.f32.mrb[0].mxu0
        %1118 = vdwg.mxu0
        %v1119 = vld [vmem:[%s4] sm:$0xff]
        %vm1120 = vcmp.eq.f32.partialorder %v1101, 0.0
        %vm1121 = vcmp.eq.f32.partialorder %v1106, 0.0
        %vm1122 = vcmp.eq.f32.partialorder %v1111, 0.0
        %vm1123 = vcmp.eq.f32.partialorder %v1116, 0.0
        %v1124 = vlaneseq
        %v1125 = vshrl.u32 %v1124, 7
        %v1126 = vsub.s32 0, %v1125
        %v1127 = vrot.slane %v1119, %v1126
        %v1128 = vsel %vm1120, %v1127, 0.0
        %v1129 = vsel %vm1121, %v1127, 0.0
        %v1130 = vsel %vm1122, %v1127, 0.0
        %v1131 = vsel %vm1123, %v1127, 0.0
        %v1132 = vadd.f32 %v1128, 0.0
        %v1133 = vadd.f32 %v1129, 0.0
        %v1134 = vadd.f32 %v1130, 0.0
        %v1135 = vadd.f32 %v1131, 0.0
        %vm1136 = vcmp.eq.f32.partialorder %v1101, 1.0
        %vm1137 = vcmp.eq.f32.partialorder %v1106, 1.0
        %vm1138 = vcmp.eq.f32.partialorder %v1111, 1.0
        %vm1139 = vcmp.eq.f32.partialorder %v1116, 1.0
        %v1140 = vlaneseq
        %v1141 = vshrl.u32 %v1140, 7
        %v1142 = vsub.s32 1, %v1141
        %v1143 = vrot.slane %v1119, %v1142
        %v1144 = vsel %vm1136, %v1143, 0.0
        %v1145 = vsel %vm1137, %v1143, 0.0
        %v1146 = vsel %vm1138, %v1143, 0.0
        %v1147 = vsel %vm1139, %v1143, 0.0
        %v1148 = vadd.f32 %v1132, %v1144
        %v1149 = vadd.f32 %v1133, %v1145
        %v1150 = vadd.f32 %v1134, %v1146
        %v1151 = vadd.f32 %v1135, %v1147
        %vm1152 = vcmp.eq.f32.partialorder %v1101, 2.0
        %vm1153 = vcmp.eq.f32.partialorder %v1106, 2.0
        %vm1154 = vcmp.eq.f32.partialorder %v1111, 2.0
        %vm1155 = vcmp.eq.f32.partialorder %v1116, 2.0
        %v1156 = vlaneseq
        %v1157 = vshrl.u32 %v1156, 7
        %v1158 = vsub.s32 2, %v1157
        %v1159 = vrot.slane %v1119, %v1158
        %v1160 = vsel %vm1152, %v1159, 0.0
        %v1161 = vsel %vm1153, %v1159, 0.0
        %v1162 = vsel %vm1154, %v1159, 0.0
        %v1163 = vsel %vm1155, %v1159, 0.0
        %v1164 = vadd.f32 %v1148, %v1160
        %v1165 = vadd.f32 %v1149, %v1161
        %v1166 = vadd.f32 %v1150, %v1162
        %v1167 = vadd.f32 %v1151, %v1163
        %vm1168 = vcmp.eq.f32.partialorder %v1101, 3.0
        %vm1169 = vcmp.eq.f32.partialorder %v1106, 3.0
        %vm1170 = vcmp.eq.f32.partialorder %v1111, 3.0
        %vm1171 = vcmp.eq.f32.partialorder %v1116, 3.0
        %v1172 = vlaneseq
        %v1173 = vshrl.u32 %v1172, 7
        %v1174 = vsub.s32 3, %v1173
        %v1175 = vrot.slane %v1119, %v1174
        %v1176 = vsel %vm1168, %v1175, 0.0
        %v1177 = vsel %vm1169, %v1175, 0.0
        %v1178 = vsel %vm1170, %v1175, 0.0
        %v1179 = vsel %vm1171, %v1175, 0.0
        %v1180 = vadd.f32 %v1164, %v1176
        %v1181 = vadd.f32 %v1165, %v1177
        %v1182 = vadd.f32 %v1166, %v1178
        %v1183 = vadd.f32 %v1167, %v1179
        %vm1184 = vcmp.eq.f32.partialorder %v1101, 4.0
        %vm1185 = vcmp.eq.f32.partialorder %v1106, 4.0
        %vm1186 = vcmp.eq.f32.partialorder %v1111, 4.0
        %vm1187 = vcmp.eq.f32.partialorder %v1116, 4.0
        %v1188 = vlaneseq
        %v1189 = vshrl.u32 %v1188, 7
        %v1190 = vsub.s32 4, %v1189
        %v1191 = vrot.slane %v1119, %v1190
        %v1192 = vsel %vm1184, %v1191, 0.0
        %v1193 = vsel %vm1185, %v1191, 0.0
        %v1194 = vsel %vm1186, %v1191, 0.0
        %v1195 = vsel %vm1187, %v1191, 0.0
        %v1196 = vadd.f32 %v1180, %v1192
        %v1197 = vadd.f32 %v1181, %v1193
        %v1198 = vadd.f32 %v1182, %v1194
        %v1199 = vadd.f32 %v1183, %v1195
        %vm1200 = vcmp.eq.f32.partialorder %v1101, 5.0
        %vm1201 = vcmp.eq.f32.partialorder %v1106, 5.0
        %vm1202 = vcmp.eq.f32.partialorder %v1111, 5.0
        %vm1203 = vcmp.eq.f32.partialorder %v1116, 5.0
        %v1204 = vlaneseq
        %v1205 = vshrl.u32 %v1204, 7
        %v1206 = vsub.s32 5, %v1205
        %v1207 = vrot.slane %v1119, %v1206
        %v1208 = vsel %vm1200, %v1207, 0.0
        %v1209 = vsel %vm1201, %v1207, 0.0
        %v1210 = vsel %vm1202, %v1207, 0.0
        %v1211 = vsel %vm1203, %v1207, 0.0
        %v1212 = vadd.f32 %v1196, %v1208
        %v1213 = vadd.f32 %v1197, %v1209
        %v1214 = vadd.f32 %v1198, %v1210
        %v1215 = vadd.f32 %v1199, %v1211
        %vm1216 = vcmp.eq.f32.partialorder %v1101, 6.0
        %vm1217 = vcmp.eq.f32.partialorder %v1106, 6.0
        %vm1218 = vcmp.eq.f32.partialorder %v1111, 6.0
        %vm1219 = vcmp.eq.f32.partialorder %v1116, 6.0
        %v1220 = vlaneseq
        %v1221 = vshrl.u32 %v1220, 7
        %v1222 = vsub.s32 6, %v1221
        %v1223 = vrot.slane %v1119, %v1222
        %v1224 = vsel %vm1216, %v1223, 0.0
        %v1225 = vsel %vm1217, %v1223, 0.0
        %v1226 = vsel %vm1218, %v1223, 0.0
        %v1227 = vsel %vm1219, %v1223, 0.0
        %v1228 = vadd.f32 %v1212, %v1224
        %v1229 = vadd.f32 %v1213, %v1225
        %v1230 = vadd.f32 %v1214, %v1226
        %v1231 = vadd.f32 %v1215, %v1227
        %vm1232 = vcmp.eq.f32.partialorder %v1101, 7.0
        %vm1233 = vcmp.eq.f32.partialorder %v1106, 7.0
        %vm1234 = vcmp.eq.f32.partialorder %v1111, 7.0
        %vm1235 = vcmp.eq.f32.partialorder %v1116, 7.0
        %v1236 = vlaneseq
        %v1237 = vshrl.u32 %v1236, 7
        %v1238 = vsub.s32 7, %v1237
        %v1239 = vrot.slane %v1119, %v1238
        %v1240 = vsel %vm1232, %v1239, 0.0
        %v1241 = vsel %vm1233, %v1239, 0.0
        %v1242 = vsel %vm1234, %v1239, 0.0
        %v1243 = vsel %vm1235, %v1239, 0.0
        %v1244 = vadd.f32 %v1228, %v1240
        %v1245 = vadd.f32 %v1229, %v1241
        %v1246 = vadd.f32 %v1230, %v1242
        %v1247 = vadd.f32 %v1231, %v1243
        %v1248 = vld [vmem:[#allocation8] sm:$0xff]
        %v1249 = vld [vmem:[#allocation8 + $0x8] sm:$0xff]
        %v1250 = vld [vmem:[#allocation8 + $0x10] sm:$0xff]
        %v1251 = vld [vmem:[#allocation8 + $0x18] sm:$0xff]
        %v1252 = vld [vmem:[#allocation8 + $0x20] sm:$0xff]
        %v1253 = vld [vmem:[#allocation8 + $0x28] sm:$0xff]
        %v1254 = vld [vmem:[#allocation8 + $0x30] sm:$0xff]
        %v1255 = vld [vmem:[#allocation8 + $0x38] sm:$0xff]
        %v1256 = vld [vmem:[#allocation8 + $0x40] sm:$0xff]
        %v1257 = vld [vmem:[#allocation8 + $0x48] sm:$0xff]
        %v1258 = vld [vmem:[#allocation8 + $0x50] sm:$0xff]
        %v1259 = vld [vmem:[#allocation8 + $0x58] sm:$0xff]
        %v1260 = vld [vmem:[#allocation8 + $0x60] sm:$0xff]
        %v1261 = vld [vmem:[#allocation8 + $0x68] sm:$0xff]
        %v1262 = vld [vmem:[#allocation8 + $0x70] sm:$0xff]
        %v1263 = vld [vmem:[#allocation8 + $0x78] sm:$0xff]
        %1264 = vmatprep.subr.mxu0 0.0
        %1265 = vmatpush1.msra.mxu0 %v1248
        %1266 = vmatprep.subr.mxu0 0.0
        %1267 = vmatpush1.msra.mxu0 %v1249
        %1268 = vmatprep.subr.mxu0 0.0
        %1269 = vmatpush1.msra.mxu0 %v1250
        %1270 = vmatprep.subr.mxu0 0.0
        %1271 = vmatpush1.msra.mxu0 %v1251
        %1272 = vmatprep.subr.mxu0 0.0
        %1273 = vmatpush1.msra.mxu0 %v1252
        %1274 = vmatprep.subr.mxu0 0.0
        %1275 = vmatpush1.msra.mxu0 %v1253
        %1276 = vmatprep.subr.mxu0 0.0
        %1277 = vmatpush1.msra.mxu0 %v1254
        %1278 = vmatprep.subr.mxu0 0.0
        %1279 = vmatpush1.msra.mxu0 %v1255
        %1280 = vmatprep.subr.mxu0 0.0
        %1281 = vmatpush1.msra.mxu0 %v1256
        %1282 = vmatprep.subr.mxu0 0.0
        %1283 = vmatpush1.msra.mxu0 %v1257
        %1284 = vmatprep.subr.mxu0 0.0
        %1285 = vmatpush1.msra.mxu0 %v1258
        %1286 = vmatprep.subr.mxu0 0.0
        %1287 = vmatpush1.msra.mxu0 %v1259
        %1288 = vmatprep.subr.mxu0 0.0
        %1289 = vmatpush1.msra.mxu0 %v1260
        %1290 = vmatprep.subr.mxu0 0.0
        %1291 = vmatpush1.msra.mxu0 %v1261
        %1292 = vmatprep.subr.mxu0 0.0
        %1293 = vmatpush1.msra.mxu0 %v1262
        %1294 = vmatprep.subr.mxu0 0.0
        %1295 = vmatpush1.msra.mxu0 %v1263
        %1296 = vmatprep.subr.mxu0 0.0
        %1297 = vmatpush1.msra.mxu0 0.0
        %1298 = vmatprep.subr.mxu0 0.0
        %1299 = vmatpush1.msra.mxu0 0.0
        %1300 = vmatprep.subr.mxu0 0.0
        %1301 = vmatpush1.msra.mxu0 0.0
        %1302 = vmatprep.subr.mxu0 0.0
        %1303 = vmatpush1.msra.mxu0 0.0
        %1304 = vmatprep.subr.mxu0 0.0
        %1305 = vmatpush1.msra.mxu0 0.0
        %1306 = vmatprep.subr.mxu0 0.0
        %1307 = vmatpush1.msra.mxu0 0.0
        %1308 = vmatprep.subr.mxu0 0.0
        %1309 = vmatpush1.msra.mxu0 0.0
        %1310 = vmatprep.subr.mxu0 0.0
        %1311 = vmatpush1.msra.mxu0 0.0
        %1312 = vmatprep.subr.mxu0 0.0
        %1313 = vmatpush1.msra.mxu0 0.0
        %1314 = vmatprep.subr.mxu0 0.0
        %1315 = vmatpush1.msra.mxu0 0.0
        %1316 = vmatprep.subr.mxu0 0.0
        %1317 = vmatpush1.msra.mxu0 0.0
        %1318 = vmatprep.subr.mxu0 0.0
        %1319 = vmatpush1.msra.mxu0 0.0
        %1320 = vmatprep.subr.mxu0 0.0
        %1321 = vmatpush1.msra.mxu0 0.0
        %1322 = vmatprep.subr.mxu0 0.0
        %1323 = vmatpush1.msra.mxu0 0.0
        %1324 = vmatprep.subr.mxu0 0.0
        %1325 = vmatpush1.msra.mxu0 0.0
        %1326 = vmatprep.subr.mxu0 0.0
        %1327 = vmatpush1.msra.mxu0 0.0
        %1328 = vmatprep.mubr.f32.mxu0 0.0
        %1329 = vmatmul.mubr.f32.gmra.mrb[0].mxu0 %v1244
        %v1330 = vpop.f32.mrb[0].mxu0
        %v1331 = vadd.f32 0.0, %v1330
        %v1332 = vpop.f32.mrb[0].mxu0
        %1333 = vmatprep.mubr.f32.mxu0 0.0
        %1334 = vmatmul.mubr.f32.gmra.mrb[0].mxu0 %v1245
        %v1335 = vpop.f32.mrb[0].mxu0
        %v1336 = vadd.f32 0.0, %v1335
        %v1337 = vpop.f32.mrb[0].mxu0
        %1338 = vmatprep.mubr.f32.mxu0 0.0
        %1339 = vmatmul.mubr.f32.gmra.mrb[0].mxu0 %v1246
        %v1340 = vpop.f32.mrb[0].mxu0
        %v1341 = vadd.f32 0.0, %v1340
        %v1342 = vpop.f32.mrb[0].mxu0
        %1343 = vmatprep.mubr.f32.mxu0 0.0
        %1344 = vmatmul.mubr.f32.gmra.mrb[0].mxu0 %v1247
        %v1345 = vpop.f32.mrb[0].mxu0
        %v1346 = vadd.f32 0.0, %v1345
        %v1347 = vpop.f32.mrb[0].mxu0
        %1348 = vdwg.mxu0
        %v1349 = vlaneseq
        %v1350 = vand.u32 %v1349, 127
        %vm1351 = vcmp.lt.s32.totalorder %v1350, 10
        %v1352 = vsel %vm1351, 1, 0
        %vm1353 = vcmp.eq.s32.totalorder %v1352, 1
        %v1354 = vsel %vm1353, %v1331, -1e+30
        %v1355 = vsel %vm1353, %v1336, -1e+30
        %v1356 = vsel %vm1353, %v1341, -1e+30
        %v1357 = vsel %vm1353, %v1346, -1e+30
        %1358 = vmax.xlane.f32.xlu0 %v1354
        %v1359 = vpop.xlane.xlu0 %1358
        %1360 = vmax.xlane.f32.xlu0 %v1355
        %v1361 = vpop.xlane.xlu0 %1360
        %1362 = vmax.xlane.f32.xlu0 %v1356
        %v1363 = vpop.xlane.xlu0 %1362
        %1364 = vmax.xlane.f32.xlu0 %v1357
        %v1365 = vpop.xlane.xlu0 %1364
        %v1366 = vsub.f32 %v1354, %v1359
        %v1367 = vsub.f32 %v1355, %v1361
        %v1368 = vsub.f32 %v1356, %v1363
        %v1369 = vsub.f32 %v1357, %v1365
        %v1370 = vmul.f32 %v1366, 1.442695
        %v1371 = vpow.pop %v1370
        %v1372 = vmul.f32 %v1367, 1.442695
        %v1373 = vpow.pop %v1372
        %v1374 = vmul.f32 %v1368, 1.442695
        %v1375 = vpow.pop %v1374
        %v1376 = vmul.f32 %v1369, 1.442695
        %v1377 = vpow.pop %v1376
        %1378 = vadd.xlane.f32.xlu0 %v1371
        %v1379 = vpop.xlane.xlu0 %1378
        %1380 = vadd.xlane.f32.xlu0 %v1373
        %v1381 = vpop.xlane.xlu0 %1380
        %1382 = vadd.xlane.f32.xlu0 %v1375
        %v1383 = vpop.xlane.xlu0 %1382
        %1384 = vadd.xlane.f32.xlu0 %v1377
        %v1385 = vpop.xlane.xlu0 %1384
        %v1386 = vrcp.pop %v1379
        %v1387 = vrcp.pop %v1381
        %v1388 = vrcp.pop %v1383
        %v1389 = vrcp.pop %v1385
        %v1390 = vmul.f32 %v1371, %v1386
        %v1391 = vmul.f32 %v1373, %v1387
        %v1392 = vmul.f32 %v1375, %v1388
        %v1393 = vmul.f32 %v1377, %v1389
        %1394 = vst [vmem:[%s314] sm:$0xff] %v1390
        %1395 = vst [vmem:[%s314 + $0x8] sm:$0xff] %v1391
        %1396 = vst [vmem:[%s314 + $0x10] sm:$0xff] %v1392
        %1397 = vst [vmem:[%s314 + $0x18] sm:$0xff] %v1393
        %s1398 = sand.u32 %s164, 1
        %s1399 = scalar_lea.sflag [#allocation4], %s1398
        %s1400 = sand.u32 %s164, 1
        %s1401 = smul.addr %s1400, 32
        %s1402 = scalar_lea.vmem [#allocation10], %s1401
        // Predicated region
        $region61: #{tpu_custom_call.1} parent=43 // pred_check
          %p1403 = pneg %p174
        $region62: #{tpu_custom_call.1} parent=43 // pred_check_branch
          %1405 = sbr.rel (%p1403) target = $region64
        $region63: #{tpu_custom_call.1} parent=43 // pred_region
          %s1406 = smul.u32 4, %s25
          %s1408 = ssub.s32 512, 512
          %1409 = vsyncadd %s1399, %s1408
          %s1410 = smul.addr %s1406, 128
          %s1411 = scalar_lea.hbm %s6, %s1410
          %s1412 = sshll.u32 %s1402, 4
          %s1413 = int_to_ptr.vmem [resolvable:$true] %s1412
          %1418 = dma.vmem_to_hbm [thread:$0]  %s1413, 512, %s1411, %s1399, 128, 128, 8
        $region64: #{tpu_custom_call.1} parent=43 // pred_fallthru
          _
      $region44: #{tpu_custom_call.1} parent=5 // pred_fallthru
        _
      %p1419 = scmp.le.s32.totalorder 2, %s20
      // Predicated region
      $region65: #{tpu_custom_call.1} parent=5 // pred_check
        %p1420 = pneg %p1419
      $region66: #{tpu_custom_call.1} parent=5 // pred_check_branch
        %1422 = sbr.rel (%p1420) target = $region68
      $region67: #{tpu_custom_call.1} parent=5 // pred_region
        %s1423 = ssub.s32 %s20, 2
        // Predicated region
        $region69: #{tpu_custom_call.1} parent=67 // pred_check
          %p1424 = pneg %p180
        $region70: #{tpu_custom_call.1} parent=67 // pred_check_branch
          %1426 = sbr.rel (%p1424) target = $region72
        $region71: #{tpu_custom_call.1} parent=67 // pred_region
          %s1427 = sand.u32 %s165, 1
          %s1428 = scalar_lea.sflag [#allocation4], %s1427
          %s1429 = sand.u32 %s165, 1
          %s1430 = smul.addr %s1429, 32
          %s1431 = scalar_lea.vmem [#allocation10], %s1430
          %1432 = dma.done %s1428, 512
        $region72: #{tpu_custom_call.1} parent=67 // pred_fallthru
          _
      $region68: #{tpu_custom_call.1} parent=5 // pred_fallthru
        _
    $region6: #{tpu_custom_call.1} parent=1 // loop_footer
      %s24 = sadd.s32 1, %s20
    $region7: #{tpu_custom_call.1} parent=1 // loop_footer_branch
      %19 = sbr.rel target = $region3
    $region8: #{tpu_custom_call.1} parent=1 // loop_exit
      _
    %1433 = vsyncpa [#allocation3], 1
    %s1434 = scalar_lea.sflag [#allocation3], 1
    %1435 = vsyncpa %s1434, 1
    %1436 = vsyncpa [#allocation6], 1
    %1437 = vsyncpa [#allocation9], 1
    %1438 = vsyncpa [#allocation4], 1
    %s1439 = scalar_lea.sflag [#allocation4], 1
    %1440 = vsyncpa %s1439, 1

</llo_original>
